<compile_context>
chip_gen: v7x
topology: tpu7x:2x2x1
jax: 0.10.0
libtpu: 0.0.40
codegen_flags: <defaults>
</compile_context>

<pallas_src>
import functools

import jax
import jax.numpy as jnp
from jax import lax
from jax.experimental import pallas as pl
from jax.experimental.pallas import tpu as pltpu


# ConvTranspose2d(k=4, s=2, p=1):  oy = 2*q + ry, padded input row = q + ry + a,
# kernel tap ky = 3 - ry - 2*a (same table for columns / rx / b).
_KTAP = ((3, 1), (2, 0))   # _KTAP[parity][offset]


# --------------------------------------------------------------------------
# VMEM budgeting helpers
# --------------------------------------------------------------------------
def _ceil_to(x, m):
    return -(-x // m) * m


def _padded_bytes(shape, dtype):
    """Rough (8,128)-padded VMEM footprint of one block / temporary."""
    shape = tuple(int(d) for d in shape)
    if len(shape) < 2:
        shape = (1,) + shape
    lead = 1
    for d in shape[:-2]:
        lead *= d
    return lead * _ceil_to(shape[-2], 8) * _ceil_to(shape[-1], 128) * \
        jnp.dtype(dtype).itemsize


def _physical_vmem_bytes():
    try:
        return int(pltpu.get_tpu_info().vmem_capacity_bytes)
    except Exception:          # older/newer jax: fall back to smallest (v7x)
        return 64 << 20


def _vmem_limit(block_specs, extra_bytes=0):
    """Estimate + headroom, capped at ~75% of this generation's physical VMEM."""
    total = sum(_padded_bytes(s, d) for (s, d) in block_specs)
    want = 2 * total + int(extra_bytes) + (16 << 20)   # double-buffering + temps
    cap = (3 * _physical_vmem_bytes()) // 4            # ~48 MiB v7x, ~96 MiB v5e/v6e
    return int(min(max(want, 32 << 20), cap))


# --------------------------------------------------------------------------
# Kernel 1: row-tiled transposed conv (per-parity taps -> MXU matmuls)
#           + in-VMEM accumulation of per-tile BN statistics.
# --------------------------------------------------------------------------
def _convt_stats_kernel(xpad_ref, w_ref, b_ref, out_ref, stats_ref,
                        *, TH, W, cin, cout, concat_k):
    """One (batch, row-tile, row-parity) grid step.

    xpad_ref  : (1, H+2, W+2, cin)     bf16, padded NHWC input (resident per batch)
    w_ref     : (2, 2, 4*cin, cout)    bf16, tap-concatenated weights (fully resident)
    b_ref     : (1, 2*cout)            f32 bias tiled over the two column parities
    out_ref   : (1, TH, 1, W, 2*cout)  bf16 parity-interleaved output tile
    stats_ref : (1, 1, 1, 2, 2*cout)   f32 [sum, sum_sq] of this tile (per (rx,c) lane)
    """
    t = pl.program_id(1)
    ry = pl.program_id(2)
    row0 = t * TH + ry

    # Load the two window-row slabs once; the three column shifts (0,1,2) are
    # materialized once and shared by both column parities (rx).
    slabs = []                                    # slabs[a][c] : (TH*W, cin) bf16
    for a in range(2):
        rows = xpad_ref[0, pl.ds(row0 + a, TH), :, :]        # (TH, W+2, cin)
        slabs.append([rows[:, c:c + W, :].reshape(TH * W, cin) for c in range(3)])

    accs = []
    for rx in range(2):
        if concat_k:
            # Small Cin: fuse the 4 taps into one MXU matmul with K = 4*Cin.
            xs4 = jnp.concatenate(
                [slabs[a][rx + b] for a in range(2) for b in range(2)], axis=-1)
            acc = jnp.dot(xs4, w_ref[ry, rx],
                          preferred_element_type=jnp.float32)
        else:
            # Large Cin: 4 accumulating matmuls of K = Cin (no 4*Cin concat copy).
            acc = jnp.zeros((TH * W, cout), jnp.float32)
            for a in range(2):
                for b in range(2):
                    tap = a * 2 + b
                    acc = acc + jnp.dot(
                        slabs[a][rx + b],
                        w_ref[ry, rx, tap * cin:(tap + 1) * cin, :],
                        preferred_element_type=jnp.float32)
        accs.append(acc)

    y = jnp.concatenate(accs, axis=-1) + b_ref[...]          # (TH*W, 2*cout) f32

    # BN statistics while the tile is still in VMEM (no extra HBM pass).
    stats_ref[0, 0, 0, 0:1, :] = jnp.sum(y, axis=0, keepdims=True)
    stats_ref[0, 0, 0, 1:2, :] = jnp.sum(y * y, axis=0, keepdims=True)

    # Single lane-dense store of both column parities (bf16 intermediate).
    out_ref[0, :, 0, :, :] = y.reshape(TH, W, 2 * cout).astype(out_ref.dtype)


def _pick_conv_row_tile(H, W, cin, cout, budget_bytes=8 << 20):
    """Largest divisor of H whose in-kernel temporaries fit the VMEM budget."""
    per_row = W * (14 * cin * 2 + 12 * cout * 4) + 2 * (W + 2) * cin * 2
    cap = max(1, budget_bytes // max(per_row, 1))
    th = 1
    for d in range(1, H + 1):
        if H % d == 0 and d <= cap:
            th = d
    return th


def conv_transpose2d_bn_stats_pallas(x_nhwc, w, b):
    """ConvTranspose2d(k=4, s=2, p=1) + per-tile per-channel sum / sum-of-squares.

    x_nhwc : (N, H, W, Cin) f32
    w      : (Cin, Cout, 4, 4) f32   (PyTorch ConvTranspose2d layout)
    b      : (Cout,) f32
    Returns (y, stats, th):
      y     : (N, H, 2, W, 2*Cout) bf16 ; y.reshape(N, 2H, 2W, Cout) is the NHWC
              conv output (pure row-major view, no data movement)
      stats : (N, H//th, 2, 2, 2*Cout) f32 per-tile [sum, sumsq] per (rx, c) lane
      th    : conv row-tile size (rows of the low-res image per grid step)
    """
    N, H, W, cin = x_nhwc.shape
    cout = w.shape[1]
    th = _pick_conv_row_tile(H, W, cin, cout)
    n_t = H // th
    concat_k = cin < 128

    # One-time prep in XLA (outside the hot loop).
    x_pad = jnp.pad(x_nhwc, ((0, 0), (1, 1), (1, 1), (0, 0))).astype(jnp.bfloat16)
    w_k = jnp.transpose(w, (2, 3, 0, 1))                   # (4, 4, cin, cout)
    w_cat = jnp.stack([
        jnp.stack([
            jnp.concatenate(
                [w_k[_KTAP[ry][a], _KTAP[rx][bb]] for a in (0, 1) for bb in (0, 1)],
                axis=0)                                     # (4*cin, cout)
            for rx in (0, 1)], axis=0)
        for ry in (0, 1)], axis=0).astype(jnp.bfloat16)     # (2, 2, 4*cin, cout)
    b2 = jnp.tile(b.astype(jnp.float32), 2).reshape(1, 2 * cout)

    kernel = functools.partial(_convt_stats_kernel, TH=th, W=W, cin=cin,
                               cout=cout, concat_k=concat_k)

    blocks = [((1, H + 2, W + 2, cin), jnp.bfloat16),
              ((2, 2, 4 * cin, cout), jnp.bfloat16),
              ((1, 2 * cout), jnp.float32),
              ((1, th, 1, W, 2 * cout), jnp.bfloat16),
              ((1, 1, 1, 2, 2 * cout), jnp.float32)]
    extra = (6 * _padded_bytes((th * W, cin), jnp.bfloat16)
             + 2 * _padded_bytes((th * W, 4 * cin), jnp.bfloat16)
             + 2 * _padded_bytes((th, W + 2, cin), jnp.bfloat16)
             + 4 * _padded_bytes((th * W, 2 * cout), jnp.float32))

    y, stats = pl.pallas_call(
        kernel,
        out_shape=(jax.ShapeDtypeStruct((N, H, 2, W, 2 * cout), jnp.bfloat16),
                   jax.ShapeDtypeStruct((N, n_t, 2, 2, 2 * cout), jnp.float32)),
        grid_spec=pltpu.PrefetchScalarGridSpec(
            num_scalar_prefetch=0,
            grid=(N, n_t, 2),
            in_specs=[
                # padded input: resident per batch (sliced in-kernel with pl.ds)
                pl.BlockSpec((1, H + 2, W + 2, cin), lambda n, t, r: (n, 0, 0, 0)),
                # tap-concatenated weights: fully resident (loaded once)
                pl.BlockSpec((2, 2, 4 * cin, cout), lambda n, t, r: (0, 0, 0, 0)),
                pl.BlockSpec((1, 2 * cout), lambda n, t, r: (0, 0)),
            ],
            out_specs=[
                pl.BlockSpec((1, th, 1, W, 2 * cout), lambda n, t, r: (n, t, r, 0, 0)),
                pl.BlockSpec((1, 1, 1, 2, 2 * cout), lambda n, t, r: (n, t, r, 0, 0)),
            ],
        ),
        compiler_params=pltpu.CompilerParams(
            # Row-tile axis is parallel (preferred megacore split even for N=1);
            # the parity axis is innermost / arbitrary.
            dimension_semantics=("parallel", "parallel", "arbitrary"),
            vmem_limit_bytes=_vmem_limit(blocks, extra)),
    )(x_pad, w_cat, b2)
    return y, stats, th


# --------------------------------------------------------------------------
# Kernel 2: lane-dense streaming BN-apply (y*scale + shift) + ReLU.
# --------------------------------------------------------------------------
def _affine_relu_kernel(y_ref, scale_ref, shift_ref, out_ref):
    y = y_ref[...].astype(jnp.float32)
    out_ref[...] = jnp.maximum(y * scale_ref[...] + shift_ref[...], 0.0)


def _lane_fold(m_rows, lanes, target=256, max_lanes=2048):
    """Fold rows into lanes so small channel counts still fill >=128 lanes."""
    f = 1
    while lanes * f < target and lanes * f * 2 <= max_lanes and m_rows % (f * 2) == 0:
        f *= 2
    return f


def _pick_epilogue_rows(m_rows, lanes, budget_bytes=4 << 20):
    per_row = max(1, lanes) * 6            # bf16 read + f32 write per element
    cap = max(8, budget_bytes // per_row)
    if m_rows <= cap:
        return m_rows
    best = 0
    d = 8
    while d <= cap:
        if m_rows % d == 0:
            best = d
        d += 8
    # Fallback: single full-extent block (fine for this module's even sizes).
    return best if best else m_rows


def affine_relu_pallas(y2, scale_lanes, shift_lanes):
    """Streaming (y * scale + shift) -> ReLU over a lane-dense 2-D view."""
    M, C = y2.shape
    tr = _pick_epilogue_rows(M, C)
    blocks = [((tr, C), y2.dtype), ((1, C), jnp.float32),
              ((1, C), jnp.float32), ((tr, C), jnp.float32)]
    extra = 2 * _padded_bytes((tr, C), jnp.float32)
    return pl.pallas_call(
        _affine_relu_kernel,
        out_shape=jax.ShapeDtypeStruct((M, C), jnp.float32),
        grid_spec=pltpu.PrefetchScalarGridSpec(
            num_scalar_prefetch=0,
            grid=(M // tr,),
            in_specs=[
                pl.BlockSpec((tr, C), lambda i: (i, 0)),
                pl.BlockSpec((1, C), lambda i: (0, 0)),
                pl.BlockSpec((1, C), lambda i: (0, 0)),
            ],
            out_specs=pl.BlockSpec((tr, C), lambda i: (i, 0)),
        ),
        compiler_params=pltpu.CompilerParams(
            dimension_semantics=("parallel",),
            vmem_limit_bytes=_vmem_limit(blocks, extra)),
    )(y2, scale_lanes.reshape(1, C), shift_lanes.reshape(1, C))


# --------------------------------------------------------------------------
# Module wrapper (public API is NCHW like the PyTorch module).
# --------------------------------------------------------------------------
class CDkUpsamplePallas:
    """Pallas/TPU port of CDk_upsample (pix2pix_facade.py)."""

    def __init__(self, in_channels, out_channels, use_batchnorm=True,
                 use_dropout=False, *, key):
        kw, kb = jax.random.split(key)
        # ConvTranspose2d weight layout is (in_channels, out_channels, 4, 4).
        self.w = jax.random.normal(kw, (in_channels, out_channels, 4, 4),
                                   jnp.float32) * 0.1
        self.b = jax.random.normal(kb, (out_channels,), jnp.float32) * 0.1
        # BatchNorm2d defaults: gamma = 1, beta = 0, eps = 1e-5.
        self.gamma = jnp.ones((out_channels,), jnp.float32)
        self.beta = jnp.zeros((out_channels,), jnp.float32)
        self.eps = 1e-5
        self.use_batchnorm = use_batchnorm
        self.use_dropout = use_dropout

    def __call__(self, x_nchw):
        if self.use_dropout:
            # TODO(synk): training-mode Dropout(0.5) via pltpu.prng_seed +
            # pltpu.stateful_bernoulli; module default is use_dropout=False.
            raise NotImplementedError(
                "use_dropout=True is not implemented in the Pallas port")

        x_nhwc = jnp.transpose(x_nchw, (0, 2, 3, 1))      # boundary layout change
        y5, stats, th = conv_transpose2d_bn_stats_pallas(x_nhwc, self.w, self.b)
        N, H, _, W, two_c = y5.shape
        C = two_c // 2

        if self.use_batchnorm:
            # Chan parallel merge of per-tile (count, sum, sumsq): more stable
            # than a single global E[x^2] - mean^2 at production sizes.
            sums = stats[..., 0, :].reshape(-1, C)        # (P, C); rx folds into P
            sqs = stats[..., 1, :].reshape(-1, C)
            cnt = jnp.float32(th * W)                     # elements per partition
            total = jnp.float32(sums.shape[0]) * cnt      # == N * 2H * 2W
            mean_p = sums / cnt
            m2_p = jnp.maximum(sqs - sums * mean_p, 0.0)
            mean = jnp.sum(sums, axis=0) / total
            m2 = jnp.sum(m2_p, axis=0) + cnt * jnp.sum((mean_p - mean) ** 2, axis=0)
            var = m2 / total                              # biased (training) variance
            scale = self.gamma * lax.rsqrt(var + self.eps)
            shift = self.beta - mean * scale
        else:
            scale = jnp.ones((C,), jnp.float32)
            shift = jnp.zeros((C,), jnp.float32)

        # Lane-dense 2-D view of the bf16 conv output: fold F rows into lanes
        # so small Cout still fills the 128-lane vregs of the streaming kernel.
        m_rows = N * H * 2 * W
        f = _lane_fold(m_rows, 2 * C)
        y2 = y5.reshape(m_rows // f, f * 2 * C)           # free row-major view
        scale_l = jnp.tile(jnp.concatenate([scale, scale]), f)
        shift_l = jnp.tile(jnp.concatenate([shift, shift]), f)

        out2 = affine_relu_pallas(y2, scale_l, shift_l)   # f32
        out_nhwc = out2.reshape(N, 2 * H, 2 * W, C)       # free row-major view
        # TODO(synk): final NCHW conversion left to one XLA transpose; fusing it
        # into the affine kernel needs a channels lanes->sublanes relayout whose
        # Mosaic lowering is shape-dependent.  Keep NHWC if the consumer allows.
        return jnp.transpose(out_nhwc, (0, 3, 1, 2))


def _reference_forward(x_nchw, mod: CDkUpsamplePallas):
    """Pure-JAX (XLA, f32) reference of the PyTorch forward, NCHW."""
    # ConvTranspose2d(k=4,s=2,p=1) == conv with lhs_dilation=2, pad=2, flipped kernel.
    w_flip = jnp.transpose(mod.w, (1, 0, 2, 3))[:, :, ::-1, ::-1]   # (Cout, Cin, 4, 4)
    y = lax.conv_general_dilated(
        x_nchw, w_flip,
        window_strides=(1, 1),
        padding=((2, 2), (2, 2)),
        lhs_dilation=(2, 2),
        dimension_numbers=("NCHW", "OIHW", "NCHW"),
        preferred_element_type=jnp.float32,
        precision=lax.Precision.HIGHEST,
    )
    y = y + mod.b[None, :, None, None]
    if mod.use_batchnorm:
        mean = jnp.mean(y, axis=(0, 2, 3), keepdims=True)
        var = jnp.mean((y - mean) ** 2, axis=(0, 2, 3), keepdims=True)
        y = ((y - mean) * lax.rsqrt(var + mod.eps)
             * mod.gamma[None, :, None, None] + mod.beta[None, :, None, None])
    return jnp.maximum(y, 0.0)


if __name__ == "__main__":
    key = jax.random.PRNGKey(0)
    kx, kp = jax.random.split(key)

    N, Cin, H, W = 2, 4, 16, 16
    Cout = 8
    x = jax.random.normal(kx, (N, Cin, H, W), jnp.float32)

    mod = CDkUpsamplePallas(Cin, Cout, use_batchnorm=True, use_dropout=False, key=kp)

    out = jax.block_until_ready(mod(x))               # (2, 8, 32, 32)
    ref = jax.block_until_ready(_reference_forward(x, mod))

    assert out.shape == (N, Cout, 2 * H, 2 * W), out.shape
    max_diff = float(jnp.max(jnp.abs(out - ref)))
    # bf16 MXU inputs + bf16 intermediate (f32 accumulation) -> looser tolerance
    # than the pure-f32 PyTorch reference.
    assert jnp.allclose(out, ref, atol=5e-2, rtol=5e-2), \
        "max abs diff = %s" % max_diff

    print("KERNEL_OK")
</pallas_src>

<mosaic_0001>
module attributes {stable_mosaic.version = 11 : i64} {
  func.func @_convt_stats_kernel(%arg0: i32, %arg1: i32, %arg2: i32, %arg3: memref<1x18x18x4xbf16, #tpu.memory_space<vmem>>, %arg4: memref<2x2x16x8xbf16, #tpu.memory_space<vmem>>, %arg5: memref<1x16xf32, #tpu.memory_space<vmem>>, %arg6: memref<1x16x1x16x16xbf16, #tpu.memory_space<vmem>>, %arg7: memref<1x1x1x2x16xf32, #tpu.memory_space<vmem>>) attributes {dimension_semantics = [#tpu.dimension_semantics<parallel>, #tpu.dimension_semantics<parallel>, #tpu.dimension_semantics<arbitrary>], iteration_bounds = array<i64: 2, 1, 2>, scalar_prefetch = 0 : i64, scratch_operands = 0 : i64, tpu.core_type = #tpu.core_type<tc>, window_params = [{transform_indices = @transform_0, window_bounds = array<i64: 1, 18, 18, 4>}, {pipeline_mode = #tpu.pipeline_mode<synchronous>, transform_indices = @transform_1, window_bounds = array<i64: 2, 2, 16, 8>}, {pipeline_mode = #tpu.pipeline_mode<synchronous>, transform_indices = @transform_2, window_bounds = array<i64: 1, 16>}, {transform_indices = @transform_3, window_bounds = array<i64: 1, 16, 1, 16, 16>}, {transform_indices = @transform_4, window_bounds = array<i64: 1, 1, 1, 2, 16>}]} {
    %c16_i32 = arith.constant 16 : i32
    %0 = arith.muli %arg1, %c16_i32 : i32
    %1 = arith.addi %0, %arg2 : i32
    %c0_i32 = arith.constant 0 : i32
    %2 = arith.addi %1, %c0_i32 : i32
    %c0 = arith.constant 0 : index
    %3 = arith.index_cast %2 : i32 to index
    %c0_0 = arith.constant 0 : index
    %c0_1 = arith.constant 0 : index
    %4 = vector.load %arg3[%c0, %3, %c0_0, %c0_1] : memref<1x18x18x4xbf16, #tpu.memory_space<vmem>>, vector<1x16x18x4xbf16>
    %5 = vector.shape_cast %4 : vector<1x16x18x4xbf16> to vector<16x18x4xbf16>
    %6 = vector.extract_strided_slice %5 {offsets = [0, 0, 0], sizes = [16, 16, 4], strides = [1, 1, 1]} : vector<16x18x4xbf16> to vector<16x16x4xbf16>
    %7 = vector.shape_cast %6 : vector<16x16x4xbf16> to vector<256x4xbf16>
    %8 = vector.extract_strided_slice %5 {offsets = [0, 1, 0], sizes = [16, 16, 4], strides = [1, 1, 1]} : vector<16x18x4xbf16> to vector<16x16x4xbf16>
    %9 = vector.shape_cast %8 : vector<16x16x4xbf16> to vector<256x4xbf16>
    %10 = vector.extract_strided_slice %5 {offsets = [0, 2, 0], sizes = [16, 16, 4], strides = [1, 1, 1]} : vector<16x18x4xbf16> to vector<16x16x4xbf16>
    %11 = vector.shape_cast %10 : vector<16x16x4xbf16> to vector<256x4xbf16>
    %c1_i32 = arith.constant 1 : i32
    %12 = arith.addi %1, %c1_i32 : i32
    %c0_2 = arith.constant 0 : index
    %13 = arith.index_cast %12 : i32 to index
    %c0_3 = arith.constant 0 : index
    %c0_4 = arith.constant 0 : index
    %14 = vector.load %arg3[%c0_2, %13, %c0_3, %c0_4] : memref<1x18x18x4xbf16, #tpu.memory_space<vmem>>, vector<1x16x18x4xbf16>
    %15 = vector.shape_cast %14 : vector<1x16x18x4xbf16> to vector<16x18x4xbf16>
    %16 = vector.extract_strided_slice %15 {offsets = [0, 0, 0], sizes = [16, 16, 4], strides = [1, 1, 1]} : vector<16x18x4xbf16> to vector<16x16x4xbf16>
    %17 = vector.shape_cast %16 : vector<16x16x4xbf16> to vector<256x4xbf16>
    %18 = vector.extract_strided_slice %15 {offsets = [0, 1, 0], sizes = [16, 16, 4], strides = [1, 1, 1]} : vector<16x18x4xbf16> to vector<16x16x4xbf16>
    %19 = vector.shape_cast %18 : vector<16x16x4xbf16> to vector<256x4xbf16>
    %20 = vector.extract_strided_slice %15 {offsets = [0, 2, 0], sizes = [16, 16, 4], strides = [1, 1, 1]} : vector<16x18x4xbf16> to vector<16x16x4xbf16>
    %21 = vector.shape_cast %20 : vector<16x16x4xbf16> to vector<256x4xbf16>
    %22 = tpu.concatenate %7, %9, %17, %19 in 1 : vector<256x4xbf16>, vector<256x4xbf16>, vector<256x4xbf16>, vector<256x4xbf16> -> vector<256x16xbf16>
    %23 = arith.index_cast %arg2 : i32 to index
    %c0_5 = arith.constant 0 : index
    %c0_6 = arith.constant 0 : index
    %c0_7 = arith.constant 0 : index
    %24 = vector.load %arg4[%23, %c0_5, %c0_6, %c0_7] : memref<2x2x16x8xbf16, #tpu.memory_space<vmem>>, vector<1x1x16x8xbf16>
    %25 = vector.shape_cast %24 : vector<1x1x16x8xbf16> to vector<16x8xbf16>
    %cst = arith.constant dense<0.000000e+00> : vector<256x8xf32>
    %26 = tpu.matmul %22, %25, %cst {dimension_numbers = #tpu.dot_dimension_numbers<[1], [0], [0], [1], [0, 0, 1, 1], [], []>} : vector<256x16xbf16>, vector<16x8xbf16>, vector<256x8xf32> -> vector<256x8xf32>
    %27 = tpu.concatenate %9, %11, %19, %21 in 1 : vector<256x4xbf16>, vector<256x4xbf16>, vector<256x4xbf16>, vector<256x4xbf16> -> vector<256x16xbf16>
    %28 = arith.index_cast %arg2 : i32 to index
    %c1 = arith.constant 1 : index
    %c0_8 = arith.constant 0 : index
    %c0_9 = arith.constant 0 : index
    %29 = vector.load %arg4[%28, %c1, %c0_8, %c0_9] : memref<2x2x16x8xbf16, #tpu.memory_space<vmem>>, vector<1x1x16x8xbf16>
    %30 = vector.shape_cast %29 : vector<1x1x16x8xbf16> to vector<16x8xbf16>
    %cst_10 = arith.constant dense<0.000000e+00> : vector<256x8xf32>
    %31 = tpu.matmul %27, %30, %cst_10 {dimension_numbers = #tpu.dot_dimension_numbers<[1], [0], [0], [1], [0, 0, 1, 1], [], []>} : vector<256x16xbf16>, vector<16x8xbf16>, vector<256x8xf32> -> vector<256x8xf32>
    %32 = tpu.concatenate %26, %31 in 1 : vector<256x8xf32>, vector<256x8xf32> -> vector<256x16xf32>
    %c0_11 = arith.constant 0 : index
    %c0_12 = arith.constant 0 : index
    %33 = vector.load %arg5[%c0_11, %c0_12] : memref<1x16xf32, #tpu.memory_space<vmem>>, vector<1x16xf32>
    %34 = vector.broadcast %33 : vector<1x16xf32> to vector<256x16xf32>
    %35 = arith.addf %32, %34 : vector<256x16xf32>
    %cst_13 = arith.constant dense<0.000000e+00> : vector<16xf32>
    %36 = vector.multi_reduction <add>, %35, %cst_13 [0] : vector<256x16xf32> to vector<16xf32>
    %37 = vector.shape_cast %36 : vector<16xf32> to vector<1x16xf32>
    %c0_14 = arith.constant 0 : index
    %c0_15 = arith.constant 0 : index
    %c0_16 = arith.constant 0 : index
    %c0_17 = arith.constant 0 : index
    %c0_18 = arith.constant 0 : index
    %38 = vector.load %arg7[%c0_14, %c0_15, %c0_16, %c0_17, %c0_18] : memref<1x1x1x2x16xf32, #tpu.memory_space<vmem>>, vector<1x1x1x1x16xf32>
    %39 = vector.shape_cast %38 : vector<1x1x1x1x16xf32> to vector<1x16xf32>
    %40 = vector.shape_cast %37 : vector<1x16xf32> to vector<1x1x1x1x16xf32>
    tpu.vector_store %arg7[%c0_14, %c0_15, %c0_16, %c0_17, %c0_18], %40 {strides = array<i32>} : memref<1x1x1x2x16xf32, #tpu.memory_space<vmem>>, vector<1x1x1x1x16xf32>,
    %41 = arith.mulf %35, %35 : vector<256x16xf32>
    %cst_19 = arith.constant dense<0.000000e+00> : vector<16xf32>
    %42 = vector.multi_reduction <add>, %41, %cst_19 [0] : vector<256x16xf32> to vector<16xf32>
    %43 = vector.shape_cast %42 : vector<16xf32> to vector<1x16xf32>
    %c0_20 = arith.constant 0 : index
    %c0_21 = arith.constant 0 : index
    %c0_22 = arith.constant 0 : index
    %c1_23 = arith.constant 1 : index
    %c0_24 = arith.constant 0 : index
    %44 = vector.load %arg7[%c0_20, %c0_21, %c0_22, %c1_23, %c0_24] : memref<1x1x1x2x16xf32, #tpu.memory_space<vmem>>, vector<1x1x1x1x16xf32>
    %45 = vector.shape_cast %44 : vector<1x1x1x1x16xf32> to vector<1x16xf32>
    %46 = vector.shape_cast %43 : vector<1x16xf32> to vector<1x1x1x1x16xf32>
    tpu.vector_store %arg7[%c0_20, %c0_21, %c0_22, %c1_23, %c0_24], %46 {strides = array<i32>} : memref<1x1x1x2x16xf32, #tpu.memory_space<vmem>>, vector<1x1x1x1x16xf32>,
    %47 = vector.shape_cast %35 : vector<256x16xf32> to vector<16x16x16xf32>
    %48 = arith.truncf %47 : vector<16x16x16xf32> to vector<16x16x16xbf16>
    %c0_25 = arith.constant 0 : index
    %c0_26 = arith.constant 0 : index
    %c0_27 = arith.constant 0 : index
    %c0_28 = arith.constant 0 : index
    %c0_29 = arith.constant 0 : index
    %49 = vector.load %arg6[%c0_25, %c0_26, %c0_27, %c0_28, %c0_29] : memref<1x16x1x16x16xbf16, #tpu.memory_space<vmem>>, vector<1x16x1x16x16xbf16>
    %50 = vector.shape_cast %49 : vector<1x16x1x16x16xbf16> to vector<16x16x16xbf16>
    %51 = vector.shape_cast %48 : vector<16x16x16xbf16> to vector<1x16x1x16x16xbf16>
    tpu.vector_store %arg6[%c0_25, %c0_26, %c0_27, %c0_28, %c0_29], %51 {strides = array<i32>} : memref<1x16x1x16x16xbf16, #tpu.memory_space<vmem>>, vector<1x16x1x16x16xbf16>,
    return
  }
  func.func @transform_0(%arg0: i32, %arg1: i32, %arg2: i32) -> (i32, i32, i32, i32) {
    %c0_i32 = arith.constant 0 : i32
    %c0_i32_0 = arith.constant 0 : i32
    %c0_i32_1 = arith.constant 0 : i32
    %c0_i32_2 = arith.constant 0 : i32
    return %arg0, %c0_i32, %c0_i32_0, %c0_i32_1 : i32, i32, i32, i32
  }
  func.func @transform_1(%arg0: i32, %arg1: i32, %arg2: i32) -> (i32, i32, i32, i32) {
    %c0_i32 = arith.constant 0 : i32
    %c0_i32_0 = arith.constant 0 : i32
    %c0_i32_1 = arith.constant 0 : i32
    %c0_i32_2 = arith.constant 0 : i32
    %c0_i32_3 = arith.constant 0 : i32
    return %c0_i32, %c0_i32_0, %c0_i32_1, %c0_i32_2 : i32, i32, i32, i32
  }
  func.func @transform_2(%arg0: i32, %arg1: i32, %arg2: i32) -> (i32, i32) {
    %c0_i32 = arith.constant 0 : i32
    %c0_i32_0 = arith.constant 0 : i32
    %c0_i32_1 = arith.constant 0 : i32
    return %c0_i32, %c0_i32_0 : i32, i32
  }
  func.func @transform_3(%arg0: i32, %arg1: i32, %arg2: i32) -> (i32, i32, i32, i32, i32) {
    %c0_i32 = arith.constant 0 : i32
    %c0_i32_0 = arith.constant 0 : i32
    %c0_i32_1 = arith.constant 0 : i32
    return %arg0, %arg1, %arg2, %c0_i32, %c0_i32_0 : i32, i32, i32, i32, i32
  }
  func.func @transform_4(%arg0: i32, %arg1: i32, %arg2: i32) -> (i32, i32, i32, i32, i32) {
    %c0_i32 = arith.constant 0 : i32
    %c0_i32_0 = arith.constant 0 : i32
    %c0_i32_1 = arith.constant 0 : i32
    return %arg0, %arg1, %arg2, %c0_i32, %c0_i32_0 : i32, i32, i32, i32, i32
  }
}

</mosaic_0001>

<llo_original>
// kernel: tpu_custom_call.1
$region0: #{tpu_custom_call.1}
  #allocation0 [shape = 'u32[]', space=smem, size = 0x4, offset = 0x4, fixed_abs, tag = 'smem constant byte address 0x4 - core index']
  #allocation1 [shape = 'u32[144,128]{1,0:T(1,128)}', space=vmem, size = 0x12000, scoped, tag = 'internal scratch']
  #allocation6 [shape = 's32[]', space=sflag, size = 0x4, offset = 0, fixed_abs, tag = 'sflag constant byte address 0x0 - dummy sync flag']
  %s0 = inlined_call_operand.vmem [shape: bf16[2,18,18,4], index: 0, kind: input, shape index: {}]
  %s1 = inlined_call_operand.vmem [shape: bf16[2,2,16,8], index: 1, kind: input, shape index: {}]
  %s2 = inlined_call_operand.vmem [shape: f32[1,16], index: 2, kind: input, shape index: {}]
  %s3 = inlined_call_operand.hbm [shape: bf16[2,16,2,16,16], index: 3, kind: output, shape index: {0}]
  %s4 = inlined_call_operand.hbm [shape: f32[2,1,2,2,16], index: 4, kind: output, shape index: {1}]
  %5 = xla_tuple %s3, %s4
  %s6 = sld [smem:[#allocation0]]
  $region53: #{tpu_custom_call.1} parent=0
    _
  %s8 = ssub.s32 1, %s6
  %s9 = scalar_select 0, %s8, %s6
  $region1: #{tpu_custom_call.1} parent=0
    #allocation2 [shape = 'u8[131072]{0}', space=vmem, size = 0x20000, scoped, tag = 'output window, operand 0']
    #allocation3 [shape = 's32[2]{0}', space=sflag, size = 0x8, scoped, tag = 'scoped memory for tpu_custom_call.1']
    #allocation4 [shape = 'u8[2048]{0}', space=vmem, size = 0x800, scoped, tag = 'output window, operand 1']
    #allocation5 [shape = 's32[2]{0}', space=sflag, size = 0x8, scoped, tag = 'scoped memory for tpu_custom_call.1']
    %10 = vsyncpa [#allocation3], 0
    %s11 = scalar_lea.sflag [#allocation3], 1
    %12 = vsyncpa %s11, 0
    %13 = vsyncpa [#allocation5], 0
    %s14 = scalar_lea.sflag [#allocation5], 1
    %15 = vsyncpa %s14, 0
    loop: start=0, step=1, limit=6
    $region2: #{tpu_custom_call.1} parent=1 // loop_pre_header
      _
    $region3: #{tpu_custom_call.1} parent=1 // loop_header
      %s17 = sphi 0, %s21
      %p18 = scmp.ge.s32.totalorder %s17, 6
      %s24 = sphi 0, %s43
      %s25 = sphi 0, %s39
      %s26 = sphi 0, %s35
      %s27 = sphi 0, %s24
      %s28 = sphi 0, %s25
      %s29 = sphi 0, %s26
      %s30 = sphi 0, %s27
      %s31 = sphi 0, %s28
      %s32 = sphi 0, %s29
      %s46 = sphi 0, %s48
      %s49 = sphi 0, %s46
      %s50 = sphi 0, %s49
      %s66 = sphi 0, %s50
      %s70 = sphi 0, %s70
      %s72 = sphi 0, %s70
      %s73 = sphi 0, %s72
      %s87 = sphi 0, %s73
      %s91 = sphi 0, %s91
      %s93 = sphi 0, %s91
      %s94 = sphi 0, %s93
      %s108 = sphi 0, %s94
      %s118 = sphi 0, %s120
      %s121 = sphi 0, %s118
      %s122 = sphi 0, %s121
      %s138 = sphi 0, %s122
      %s148 = sphi 0, %s150
      %s151 = sphi 0, %s148
      %s152 = sphi 0, %s151
      %s168 = sphi 0, %s152
    $region4: #{tpu_custom_call.1} parent=1 // loop_header_branch
      %20 = sbr.rel (%p18) target = $region8
    $region5: #{tpu_custom_call.1} parent=1 // loop_body
      %s22 = ssub.s32 %s17, 1
      %s23 = ssub.s32 %s17, 2
      %s33 = sadd.s32 1, %s26
      %p34 = scmp.ge.s32.totalorder %s33, 2
      %s35 = scalar_select %p34, 0, %s33
      %s36 = sadd.s32 1, %s25
      %s37 = scalar_select %p34, %s36, %s25
      %p38 = scmp.ge.s32.totalorder %s37, 1
      %s39 = scalar_select %p38, 0, %s37
      %s40 = sadd.s32 1, %s24
      %s41 = scalar_select %p38, %s40, %s24
      %p42 = scmp.ge.s32.totalorder %s41, 2
      %s43 = scalar_select %p42, 0, %s41
      %s44 = ssub.s32 %s24, %s43
      %p45 = scmp.eq.s32.totalorder %s44, 0
      %s47 = sadd.s32 %s46, 1
      %s48 = scalar_select %p45, %s46, %s47
      %p51 = pneg %p45
      %p52 = scmp.eq.s32.totalorder %s17, 3
      %p53 = por %p51, %p52
      %p54 = scmp.ne.s32.totalorder %s46, %s49
      %p55 = scmp.eq.s32.totalorder %s17, 0
      %p56 = por %p54, %p55
      %p57 = scmp.ne.s32.totalorder %s46, %s49
      %p58 = scmp.eq.s32.totalorder %s22, 3
      %p59 = por %p57, %p58
      %p60 = scmp.ne.s32.totalorder %s49, %s50
      %p61 = scmp.eq.s32.totalorder %s22, 0
      %p62 = por %p60, %p61
      %p63 = scmp.ne.s32.totalorder %s49, %s50
      %p64 = scmp.eq.s32.totalorder %s23, 3
      %p65 = por %p63, %p64
      %p67 = scmp.ne.s32.totalorder %s50, %s66
      %p68 = scmp.eq.s32.totalorder %s23, 0
      %p69 = por %p67, %p68
      %s71 = sadd.s32 %s70, 1
      %p74 = scmp.eq.s32.totalorder %s17, 3
      %p75 = scmp.ne.s32.totalorder %s70, %s72
      %p76 = scmp.eq.s32.totalorder %s17, 0
      %p77 = por %p75, %p76
      %p78 = scmp.ne.s32.totalorder %s70, %s72
      %p79 = scmp.eq.s32.totalorder %s22, 3
      %p80 = por %p78, %p79
      %p81 = scmp.ne.s32.totalorder %s72, %s73
      %p82 = scmp.eq.s32.totalorder %s22, 0
      %p83 = por %p81, %p82
      %p84 = scmp.ne.s32.totalorder %s72, %s73
      %p85 = scmp.eq.s32.totalorder %s23, 3
      %p86 = por %p84, %p85
      %p88 = scmp.ne.s32.totalorder %s73, %s87
      %p89 = scmp.eq.s32.totalorder %s23, 0
      %p90 = por %p88, %p89
      %s92 = sadd.s32 %s91, 1
      %p95 = scmp.eq.s32.totalorder %s17, 3
      %p96 = scmp.ne.s32.totalorder %s91, %s93
      %p97 = scmp.eq.s32.totalorder %s17, 0
      %p98 = por %p96, %p97
      %p99 = scmp.ne.s32.totalorder %s91, %s93
      %p100 = scmp.eq.s32.totalorder %s22, 3
      %p101 = por %p99, %p100
      %p102 = scmp.ne.s32.totalorder %s93, %s94
      %p103 = scmp.eq.s32.totalorder %s22, 0
      %p104 = por %p102, %p103
      %p105 = scmp.ne.s32.totalorder %s93, %s94
      %p106 = scmp.eq.s32.totalorder %s23, 3
      %p107 = por %p105, %p106
      %p109 = scmp.ne.s32.totalorder %s94, %s108
      %p110 = scmp.eq.s32.totalorder %s23, 0
      %p111 = por %p109, %p110
      %s112 = ssub.s32 %s24, %s43
      %s113 = ssub.s32 %s25, %s39
      %s114 = sor.u32 %s112, %s113
      %s115 = ssub.s32 %s26, %s35
      %s116 = sor.u32 %s114, %s115
      %p117 = scmp.eq.s32.totalorder %s116, 0
      %s119 = sadd.s32 %s118, 1
      %s120 = scalar_select %p117, %s118, %s119
      %p123 = pneg %p117
      %p124 = scmp.eq.s32.totalorder %s17, 3
      %p125 = por %p123, %p124
      %p126 = scmp.ne.s32.totalorder %s118, %s121
      %p127 = scmp.eq.s32.totalorder %s17, 0
      %p128 = por %p126, %p127
      %p129 = scmp.ne.s32.totalorder %s118, %s121
      %p130 = scmp.eq.s32.totalorder %s22, 3
      %p131 = por %p129, %p130
      %p132 = scmp.ne.s32.totalorder %s121, %s122
      %p133 = scmp.eq.s32.totalorder %s22, 0
      %p134 = por %p132, %p133
      %p135 = scmp.ne.s32.totalorder %s121, %s122
      %p136 = scmp.eq.s32.totalorder %s23, 3
      %p137 = por %p135, %p136
      %p139 = scmp.ne.s32.totalorder %s122, %s138
      %p140 = scmp.eq.s32.totalorder %s23, 0
      %p141 = por %p139, %p140
      %s142 = ssub.s32 %s24, %s43
      %s143 = ssub.s32 %s25, %s39
      %s144 = sor.u32 %s142, %s143
      %s145 = ssub.s32 %s26, %s35
      %s146 = sor.u32 %s144, %s145
      %p147 = scmp.eq.s32.totalorder %s146, 0
      %s149 = sadd.s32 %s148, 1
      %s150 = scalar_select %p147, %s148, %s149
      %p153 = pneg %p147
      %p154 = scmp.eq.s32.totalorder %s17, 3
      %p155 = por %p153, %p154
      %p156 = scmp.ne.s32.totalorder %s148, %s151
      %p157 = scmp.eq.s32.totalorder %s17, 0
      %p158 = por %p156, %p157
      %p159 = scmp.ne.s32.totalorder %s148, %s151
      %p160 = scmp.eq.s32.totalorder %s22, 3
      %p161 = por %p159, %p160
      %p162 = scmp.ne.s32.totalorder %s151, %s152
      %p163 = scmp.eq.s32.totalorder %s22, 0
      %p164 = por %p162, %p163
      %p165 = scmp.ne.s32.totalorder %s151, %s152
      %p166 = scmp.eq.s32.totalorder %s23, 3
      %p167 = por %p165, %p166
      %p169 = scmp.ne.s32.totalorder %s152, %s168
      %p170 = scmp.eq.s32.totalorder %s23, 0
      %p171 = por %p169, %p170
      %p172 = scmp.le.s32.totalorder 1, %s17
      %p173 = scmp.lt.s32.totalorder %s17, 5
      %p174 = pnand %p172, %p173
      %p175 = pneg %p174
      // Predicated region
      $region9: #{tpu_custom_call.1} parent=5 // pred_check
        _
      $region10: #{tpu_custom_call.1} parent=5 // pred_check_branch
        %177 = sbr.rel (%p174) target = $region12
      $region11: #{tpu_custom_call.1} parent=5 // pred_region
        %s178 = ssub.s32 %s17, 1
        // Predicated region
        $region13: #{tpu_custom_call.1} parent=11 // pred_check
          %p179 = pneg %p83
        $region14: #{tpu_custom_call.1} parent=11 // pred_check_branch
          %181 = sbr.rel (%p179) target = $region16
        $region15: #{tpu_custom_call.1} parent=11 // pred_region
          _
        $region16: #{tpu_custom_call.1} parent=11 // pred_fallthru
          _
        // Predicated region
        $region17: #{tpu_custom_call.1} parent=11 // pred_check
          %p182 = pneg %p104
        $region18: #{tpu_custom_call.1} parent=11 // pred_check_branch
          %184 = sbr.rel (%p182) target = $region20
        $region19: #{tpu_custom_call.1} parent=11 // pred_region
          _
        $region20: #{tpu_custom_call.1} parent=11 // pred_fallthru
          _
      $region12: #{tpu_custom_call.1} parent=5 // pred_fallthru
        _
      %p185 = scmp.lt.s32.totalorder %s17, 4
      // Predicated region
      $region21: #{tpu_custom_call.1} parent=5 // pred_check
        %p186 = pneg %p185
      $region22: #{tpu_custom_call.1} parent=5 // pred_check_branch
        %188 = sbr.rel (%p186) target = $region24
      $region23: #{tpu_custom_call.1} parent=5 // pred_region
        // Predicated region
        $region25: #{tpu_custom_call.1} parent=23 // pred_check
          %p189 = pneg %p56
        $region26: #{tpu_custom_call.1} parent=23 // pred_check_branch
          %191 = sbr.rel (%p189) target = $region28
        $region27: #{tpu_custom_call.1} parent=23 // pred_region
          %p192 = scmp.lt.s32.totalorder %s24, 1
          %s193 = scalar_select %p192, %s24, 1
          %s194 = smul.addr %s193, 54
          %s195 = smul.addr %s194, 4
          %s196 = scalar_lea.vmem %s0, %s195
        $region28: #{tpu_custom_call.1} parent=23 // pred_fallthru
          _
      $region24: #{tpu_custom_call.1} parent=5 // pred_fallthru
        _
      %p197 = scmp.le.s32.totalorder 1, %s17
      %p198 = scmp.lt.s32.totalorder %s17, 5
      %p199 = pnand %p197, %p198
      %p200 = pneg %p199
      // Predicated region
      $region29: #{tpu_custom_call.1} parent=5 // pred_check
        _
      $region30: #{tpu_custom_call.1} parent=5 // pred_check_branch
        %202 = sbr.rel (%p199) target = $region32
      $region31: #{tpu_custom_call.1} parent=5 // pred_region
        %s203 = ssub.s32 %s17, 1
        %p204 = scmp.lt.s32.totalorder %s27, 1
        %s205 = scalar_select %p204, %s27, 1
        %s206 = smul.addr %s205, 54
        %s207 = smul.addr %s206, 4
        %s208 = scalar_lea.vmem %s0, %s207
        %p209 = pneg %p62
        %p210 = pneg %p59
        %p211 = pneg %p83
        %p212 = pneg %p80
        %p213 = pneg %p104
        %p214 = pneg %p101
        %p215 = pneg %p134
        %p216 = pneg %p131
        %s217 = sand.u32 %s121, 1
        %s218 = scalar_lea.sflag [#allocation3], %s217
        %s219 = sand.u32 %s121, 1
        %s220 = smul.addr %s219, 128
        %s221 = scalar_lea.vmem [#allocation2], %s220
        %p222 = pneg %p164
        %p223 = pneg %p161
        %s224 = sand.u32 %s151, 1
        %s225 = scalar_lea.sflag [#allocation5], %s224
        %s226 = sand.u32 %s151, 1
        %s227 = smul.addr %s226, 2
        %s228 = scalar_lea.vmem [#allocation4], %s227
        %p229 = scmp.lt.s32.totalorder %s27, 1
        %s230 = scalar_select %p229, %s27, 1
        %s231 = smul.addr %s230, 54
        %s232 = smul.addr %s231, 4
        %s233 = scalar_lea.vmem %s0, %s232
        %s234 = smul.u32 16, %s28
        %s236 = smul.u32 %s28, 16
        %s237 = sadd.s32 %s236, %s29
        %s238 = smul.u32 %s237, 3
        %s239 = smul.addr %s238, 4
        %s240 = scalar_lea.vmem %s233, %s239
        %v241 = vld [vmem:[%s240] sm:$0xf]
        %v242 = vld [vmem:[%s240 + $0x4] sm:$0xf]
        %v243 = vld [vmem:[%s240 + $0x8] sm:$0x1]
        %v244 = vld [vmem:[%s240 + $0xc] sm:$0xf]
        %v245 = vld [vmem:[%s240 + $0x10] sm:$0xf]
        %v246 = vld [vmem:[%s240 + $0x14] sm:$0x1]
        %v247 = vld [vmem:[%s240 + $0x18] sm:$0xf]
        %v248 = vld [vmem:[%s240 + $0x1c] sm:$0xf]
        %v249 = vld [vmem:[%s240 + $0x20] sm:$0x1]
        %v250 = vld [vmem:[%s240 + $0x24] sm:$0xf]
        %v251 = vld [vmem:[%s240 + $0x28] sm:$0xf]
        %v252 = vld [vmem:[%s240 + $0x2c] sm:$0x1]
        %v253 = vld [vmem:[%s240 + $0x30] sm:$0xf]
        %v254 = vld [vmem:[%s240 + $0x34] sm:$0xf]
        %v255 = vld [vmem:[%s240 + $0x38] sm:$0x1]
        %v256 = vld [vmem:[%s240 + $0x3c] sm:$0xf]
        %v257 = vld [vmem:[%s240 + $0x40] sm:$0xf]
        %v258 = vld [vmem:[%s240 + $0x44] sm:$0x1]
        %v259 = vld [vmem:[%s240 + $0x48] sm:$0xf]
        %v260 = vld [vmem:[%s240 + $0x4c] sm:$0xf]
        %v261 = vld [vmem:[%s240 + $0x50] sm:$0x1]
        %v262 = vld [vmem:[%s240 + $0x54] sm:$0xf]
        %v263 = vld [vmem:[%s240 + $0x58] sm:$0xf]
        %v264 = vld [vmem:[%s240 + $0x5c] sm:$0x1]
        %v265 = vld [vmem:[%s240 + $0x60] sm:$0xf]
        %v266 = vld [vmem:[%s240 + $0x64] sm:$0xf]
        %v267 = vld [vmem:[%s240 + $0x68] sm:$0x1]
        %v268 = vld [vmem:[%s240 + $0x6c] sm:$0xf]
        %v269 = vld [vmem:[%s240 + $0x70] sm:$0xf]
        %v270 = vld [vmem:[%s240 + $0x74] sm:$0x1]
        %v271 = vld [vmem:[%s240 + $0x78] sm:$0xf]
        %v272 = vld [vmem:[%s240 + $0x7c] sm:$0xf]
        %v273 = vld [vmem:[%s240 + $0x80] sm:$0x1]
        %v274 = vld [vmem:[%s240 + $0x84] sm:$0xf]
        %v275 = vld [vmem:[%s240 + $0x88] sm:$0xf]
        %v276 = vld [vmem:[%s240 + $0x8c] sm:$0x1]
        %v277 = vld [vmem:[%s240 + $0x90] sm:$0xf]
        %v278 = vld [vmem:[%s240 + $0x94] sm:$0xf]
        %v279 = vld [vmem:[%s240 + $0x98] sm:$0x1]
        %v280 = vld [vmem:[%s240 + $0x9c] sm:$0xf]
        %v281 = vld [vmem:[%s240 + $0xa0] sm:$0xf]
        %v282 = vld [vmem:[%s240 + $0xa4] sm:$0x1]
        %v283 = vld [vmem:[%s240 + $0xa8] sm:$0xf]
        %v284 = vld [vmem:[%s240 + $0xac] sm:$0xf]
        %v285 = vld [vmem:[%s240 + $0xb0] sm:$0x1]
        %v286 = vld [vmem:[%s240 + $0xb4] sm:$0xf]
        %v287 = vld [vmem:[%s240 + $0xb8] sm:$0xf]
        %v288 = vld [vmem:[%s240 + $0xbc] sm:$0x1]
        %vm289 = vsmask.f32 3328
        %vm290 = vsmask.f32 7440
        %vm291 = vmor %vm289, %vm290
        %v293 = vshrl.u32 %v241, 16
        %v295 = vrot.slane %v293, 4
        %v296 = vshll.u32 %v241, 16
        %v298 = vrot.slane %v296, 5
        %v299 = vor.u32 %v295, %v298
        %v300 = vrot.slane %v299, 4
        %v302 = vshll.u32 %v242, 16
        %v304 = vrot.slane %v302, 5
        %v305 = vsel %vm291, %v300, %v304
        %v306 = vshrl.u32 %v242, 16
        %v308 = vrot.slane %v306, 4
        %v309 = vor.u32 %v308, %v304
        %v310 = vrot.slane %v309, 4
        %v312 = vshll.u32 %v243, 16
        %v314 = vrot.slane %v312, 5
        %v315 = vsel %vm291, %v310, %v314
        %v317 = vshrl.u32 %v244, 16
        %v319 = vrot.slane %v317, 4
        %v320 = vshll.u32 %v244, 16
        %v322 = vrot.slane %v320, 5
        %v323 = vor.u32 %v319, %v322
        %v324 = vrot.slane %v323, 4
        %v326 = vshll.u32 %v245, 16
        %v328 = vrot.slane %v326, 5
        %v329 = vsel %vm291, %v324, %v328
        %v330 = vshrl.u32 %v245, 16
        %v332 = vrot.slane %v330, 4
        %v333 = vor.u32 %v332, %v328
        %v334 = vrot.slane %v333, 4
        %v336 = vshll.u32 %v246, 16
        %v338 = vrot.slane %v336, 5
        %v339 = vsel %vm291, %v334, %v338
        %v341 = vshrl.u32 %v247, 16
        %v343 = vrot.slane %v341, 4
        %v344 = vshll.u32 %v247, 16
        %v346 = vrot.slane %v344, 5
        %v347 = vor.u32 %v343, %v346
        %v348 = vrot.slane %v347, 4
        %v350 = vshll.u32 %v248, 16
        %v352 = vrot.slane %v350, 5
        %v353 = vsel %vm291, %v348, %v352
        %v354 = vshrl.u32 %v248, 16
        %v356 = vrot.slane %v354, 4
        %v357 = vor.u32 %v356, %v352
        %v358 = vrot.slane %v357, 4
        %v360 = vshll.u32 %v249, 16
        %v362 = vrot.slane %v360, 5
        %v363 = vsel %vm291, %v358, %v362
        %v365 = vshrl.u32 %v250, 16
        %v367 = vrot.slane %v365, 4
        %v368 = vshll.u32 %v250, 16
        %v370 = vrot.slane %v368, 5
        %v371 = vor.u32 %v367, %v370
        %v372 = vrot.slane %v371, 4
        %v374 = vshll.u32 %v251, 16
        %v376 = vrot.slane %v374, 5
        %v377 = vsel %vm291, %v372, %v376
        %v378 = vshrl.u32 %v251, 16
        %v380 = vrot.slane %v378, 4
        %v381 = vor.u32 %v380, %v376
        %v382 = vrot.slane %v381, 4
        %v384 = vshll.u32 %v252, 16
        %v386 = vrot.slane %v384, 5
        %v387 = vsel %vm291, %v382, %v386
        %v389 = vshrl.u32 %v253, 16
        %v391 = vrot.slane %v389, 4
        %v392 = vshll.u32 %v253, 16
        %v394 = vrot.slane %v392, 5
        %v395 = vor.u32 %v391, %v394
        %v396 = vrot.slane %v395, 4
        %v398 = vshll.u32 %v254, 16
        %v400 = vrot.slane %v398, 5
        %v401 = vsel %vm291, %v396, %v400
        %v402 = vshrl.u32 %v254, 16
        %v404 = vrot.slane %v402, 4
        %v405 = vor.u32 %v404, %v400
        %v406 = vrot.slane %v405, 4
        %v408 = vshll.u32 %v255, 16
        %v410 = vrot.slane %v408, 5
        %v411 = vsel %vm291, %v406, %v410
        %v413 = vshrl.u32 %v256, 16
        %v415 = vrot.slane %v413, 4
        %v416 = vshll.u32 %v256, 16
        %v418 = vrot.slane %v416, 5
        %v419 = vor.u32 %v415, %v418
        %v420 = vrot.slane %v419, 4
        %v422 = vshll.u32 %v257, 16
        %v424 = vrot.slane %v422, 5
        %v425 = vsel %vm291, %v420, %v424
        %v426 = vshrl.u32 %v257, 16
        %v428 = vrot.slane %v426, 4
        %v429 = vor.u32 %v428, %v424
        %v430 = vrot.slane %v429, 4
        %v432 = vshll.u32 %v258, 16
        %v434 = vrot.slane %v432, 5
        %v435 = vsel %vm291, %v430, %v434
        %v437 = vshrl.u32 %v259, 16
        %v439 = vrot.slane %v437, 4
        %v440 = vshll.u32 %v259, 16
        %v442 = vrot.slane %v440, 5
        %v443 = vor.u32 %v439, %v442
        %v444 = vrot.slane %v443, 4
        %v446 = vshll.u32 %v260, 16
        %v448 = vrot.slane %v446, 5
        %v449 = vsel %vm291, %v444, %v448
        %v450 = vshrl.u32 %v260, 16
        %v452 = vrot.slane %v450, 4
        %v453 = vor.u32 %v452, %v448
        %v454 = vrot.slane %v453, 4
        %v456 = vshll.u32 %v261, 16
        %v458 = vrot.slane %v456, 5
        %v459 = vsel %vm291, %v454, %v458
        %v461 = vshrl.u32 %v262, 16
        %v463 = vrot.slane %v461, 4
        %v464 = vshll.u32 %v262, 16
        %v466 = vrot.slane %v464, 5
        %v467 = vor.u32 %v463, %v466
        %v468 = vrot.slane %v467, 4
        %v470 = vshll.u32 %v263, 16
        %v472 = vrot.slane %v470, 5
        %v473 = vsel %vm291, %v468, %v472
        %v474 = vshrl.u32 %v263, 16
        %v476 = vrot.slane %v474, 4
        %v477 = vor.u32 %v476, %v472
        %v478 = vrot.slane %v477, 4
        %v480 = vshll.u32 %v264, 16
        %v482 = vrot.slane %v480, 5
        %v483 = vsel %vm291, %v478, %v482
        %v485 = vshrl.u32 %v265, 16
        %v487 = vrot.slane %v485, 4
        %v488 = vshll.u32 %v265, 16
        %v490 = vrot.slane %v488, 5
        %v491 = vor.u32 %v487, %v490
        %v492 = vrot.slane %v491, 4
        %v494 = vshll.u32 %v266, 16
        %v496 = vrot.slane %v494, 5
        %v497 = vsel %vm291, %v492, %v496
        %v498 = vshrl.u32 %v266, 16
        %v500 = vrot.slane %v498, 4
        %v501 = vor.u32 %v500, %v496
        %v502 = vrot.slane %v501, 4
        %v504 = vshll.u32 %v267, 16
        %v506 = vrot.slane %v504, 5
        %v507 = vsel %vm291, %v502, %v506
        %v509 = vshrl.u32 %v268, 16
        %v511 = vrot.slane %v509, 4
        %v512 = vshll.u32 %v268, 16
        %v514 = vrot.slane %v512, 5
        %v515 = vor.u32 %v511, %v514
        %v516 = vrot.slane %v515, 4
        %v518 = vshll.u32 %v269, 16
        %v520 = vrot.slane %v518, 5
        %v521 = vsel %vm291, %v516, %v520
        %v522 = vshrl.u32 %v269, 16
        %v524 = vrot.slane %v522, 4
        %v525 = vor.u32 %v524, %v520
        %v526 = vrot.slane %v525, 4
        %v528 = vshll.u32 %v270, 16
        %v530 = vrot.slane %v528, 5
        %v531 = vsel %vm291, %v526, %v530
        %v533 = vshrl.u32 %v271, 16
        %v535 = vrot.slane %v533, 4
        %v536 = vshll.u32 %v271, 16
        %v538 = vrot.slane %v536, 5
        %v539 = vor.u32 %v535, %v538
        %v540 = vrot.slane %v539, 4
        %v542 = vshll.u32 %v272, 16
        %v544 = vrot.slane %v542, 5
        %v545 = vsel %vm291, %v540, %v544
        %v546 = vshrl.u32 %v272, 16
        %v548 = vrot.slane %v546, 4
        %v549 = vor.u32 %v548, %v544
        %v550 = vrot.slane %v549, 4
        %v552 = vshll.u32 %v273, 16
        %v554 = vrot.slane %v552, 5
        %v555 = vsel %vm291, %v550, %v554
        %v557 = vshrl.u32 %v274, 16
        %v559 = vrot.slane %v557, 4
        %v560 = vshll.u32 %v274, 16
        %v562 = vrot.slane %v560, 5
        %v563 = vor.u32 %v559, %v562
        %v564 = vrot.slane %v563, 4
        %v566 = vshll.u32 %v275, 16
        %v568 = vrot.slane %v566, 5
        %v569 = vsel %vm291, %v564, %v568
        %v570 = vshrl.u32 %v275, 16
        %v572 = vrot.slane %v570, 4
        %v573 = vor.u32 %v572, %v568
        %v574 = vrot.slane %v573, 4
        %v576 = vshll.u32 %v276, 16
        %v578 = vrot.slane %v576, 5
        %v579 = vsel %vm291, %v574, %v578
        %v581 = vshrl.u32 %v277, 16
        %v583 = vrot.slane %v581, 4
        %v584 = vshll.u32 %v277, 16
        %v586 = vrot.slane %v584, 5
        %v587 = vor.u32 %v583, %v586
        %v588 = vrot.slane %v587, 4
        %v590 = vshll.u32 %v278, 16
        %v592 = vrot.slane %v590, 5
        %v593 = vsel %vm291, %v588, %v592
        %v594 = vshrl.u32 %v278, 16
        %v596 = vrot.slane %v594, 4
        %v597 = vor.u32 %v596, %v592
        %v598 = vrot.slane %v597, 4
        %v600 = vshll.u32 %v279, 16
        %v602 = vrot.slane %v600, 5
        %v603 = vsel %vm291, %v598, %v602
        %v605 = vshrl.u32 %v280, 16
        %v607 = vrot.slane %v605, 4
        %v608 = vshll.u32 %v280, 16
        %v610 = vrot.slane %v608, 5
        %v611 = vor.u32 %v607, %v610
        %v612 = vrot.slane %v611, 4
        %v614 = vshll.u32 %v281, 16
        %v616 = vrot.slane %v614, 5
        %v617 = vsel %vm291, %v612, %v616
        %v618 = vshrl.u32 %v281, 16
        %v620 = vrot.slane %v618, 4
        %v621 = vor.u32 %v620, %v616
        %v622 = vrot.slane %v621, 4
        %v624 = vshll.u32 %v282, 16
        %v626 = vrot.slane %v624, 5
        %v627 = vsel %vm291, %v622, %v626
        %v629 = vshrl.u32 %v283, 16
        %v631 = vrot.slane %v629, 4
        %v632 = vshll.u32 %v283, 16
        %v634 = vrot.slane %v632, 5
        %v635 = vor.u32 %v631, %v634
        %v636 = vrot.slane %v635, 4
        %v638 = vshll.u32 %v284, 16
        %v640 = vrot.slane %v638, 5
        %v641 = vsel %vm291, %v636, %v640
        %v642 = vshrl.u32 %v284, 16
        %v644 = vrot.slane %v642, 4
        %v645 = vor.u32 %v644, %v640
        %v646 = vrot.slane %v645, 4
        %v648 = vshll.u32 %v285, 16
        %v650 = vrot.slane %v648, 5
        %v651 = vsel %vm291, %v646, %v650
        %v653 = vshrl.u32 %v286, 16
        %v655 = vrot.slane %v653, 4
        %v656 = vshll.u32 %v286, 16
        %v658 = vrot.slane %v656, 5
        %v659 = vor.u32 %v655, %v658
        %v660 = vrot.slane %v659, 4
        %v662 = vshll.u32 %v287, 16
        %v664 = vrot.slane %v662, 5
        %v665 = vsel %vm291, %v660, %v664
        %v666 = vshrl.u32 %v287, 16
        %v668 = vrot.slane %v666, 4
        %v669 = vor.u32 %v668, %v664
        %v670 = vrot.slane %v669, 4
        %v672 = vshll.u32 %v288, 16
        %v674 = vrot.slane %v672, 5
        %v675 = vsel %vm291, %v670, %v674
        %vm724 = vcmask 1042432
        %vm725 = vcmask 1046532
        %vm726 = vmor %vm724, %vm725
        %v727 = vrot.slane %v241, 5
        %v728 = vrot.slane %v727, 4
        %v729 = vrot.slane %v242, 5
        %v730 = vsel %vm726, %v728, %v729
        %v731 = vrot.slane %v729, 4
        %v732 = vrot.slane %v243, 5
        %v733 = vsel %vm726, %v731, %v732
        %v734 = vrot.slane %v244, 5
        %v735 = vrot.slane %v734, 4
        %v736 = vrot.slane %v245, 5
        %v737 = vsel %vm726, %v735, %v736
        %v738 = vrot.slane %v736, 4
        %v739 = vrot.slane %v246, 5
        %v740 = vsel %vm726, %v738, %v739
        %v741 = vrot.slane %v247, 5
        %v742 = vrot.slane %v741, 4
        %v743 = vrot.slane %v248, 5
        %v744 = vsel %vm726, %v742, %v743
        %v745 = vrot.slane %v743, 4
        %v746 = vrot.slane %v249, 5
        %v747 = vsel %vm726, %v745, %v746
        %v748 = vrot.slane %v250, 5
        %v749 = vrot.slane %v748, 4
        %v750 = vrot.slane %v251, 5
        %v751 = vsel %vm726, %v749, %v750
        %v752 = vrot.slane %v750, 4
        %v753 = vrot.slane %v252, 5
        %v754 = vsel %vm726, %v752, %v753
        %v755 = vrot.slane %v253, 5
        %v756 = vrot.slane %v755, 4
        %v757 = vrot.slane %v254, 5
        %v758 = vsel %vm726, %v756, %v757
        %v759 = vrot.slane %v757, 4
        %v760 = vrot.slane %v255, 5
        %v761 = vsel %vm726, %v759, %v760
        %v762 = vrot.slane %v256, 5
        %v763 = vrot.slane %v762, 4
        %v764 = vrot.slane %v257, 5
        %v765 = vsel %vm726, %v763, %v764
        %v766 = vrot.slane %v764, 4
        %v767 = vrot.slane %v258, 5
        %v768 = vsel %vm726, %v766, %v767
        %v769 = vrot.slane %v259, 5
        %v770 = vrot.slane %v769, 4
        %v771 = vrot.slane %v260, 5
        %v772 = vsel %vm726, %v770, %v771
        %v773 = vrot.slane %v771, 4
        %v774 = vrot.slane %v261, 5
        %v775 = vsel %vm726, %v773, %v774
        %v776 = vrot.slane %v262, 5
        %v777 = vrot.slane %v776, 4
        %v778 = vrot.slane %v263, 5
        %v779 = vsel %vm726, %v777, %v778
        %v780 = vrot.slane %v778, 4
        %v781 = vrot.slane %v264, 5
        %v782 = vsel %vm726, %v780, %v781
        %v783 = vrot.slane %v265, 5
        %v784 = vrot.slane %v783, 4
        %v785 = vrot.slane %v266, 5
        %v786 = vsel %vm726, %v784, %v785
        %v787 = vrot.slane %v785, 4
        %v788 = vrot.slane %v267, 5
        %v789 = vsel %vm726, %v787, %v788
        %v790 = vrot.slane %v268, 5
        %v791 = vrot.slane %v790, 4
        %v792 = vrot.slane %v269, 5
        %v793 = vsel %vm726, %v791, %v792
        %v794 = vrot.slane %v792, 4
        %v795 = vrot.slane %v270, 5
        %v796 = vsel %vm726, %v794, %v795
        %v797 = vrot.slane %v271, 5
        %v798 = vrot.slane %v797, 4
        %v799 = vrot.slane %v272, 5
        %v800 = vsel %vm726, %v798, %v799
        %v801 = vrot.slane %v799, 4
        %v802 = vrot.slane %v273, 5
        %v803 = vsel %vm726, %v801, %v802
        %v804 = vrot.slane %v274, 5
        %v805 = vrot.slane %v804, 4
        %v806 = vrot.slane %v275, 5
        %v807 = vsel %vm726, %v805, %v806
        %v808 = vrot.slane %v806, 4
        %v809 = vrot.slane %v276, 5
        %v810 = vsel %vm726, %v808, %v809
        %v811 = vrot.slane %v277, 5
        %v812 = vrot.slane %v811, 4
        %v813 = vrot.slane %v278, 5
        %v814 = vsel %vm726, %v812, %v813
        %v815 = vrot.slane %v813, 4
        %v816 = vrot.slane %v279, 5
        %v817 = vsel %vm726, %v815, %v816
        %v818 = vrot.slane %v280, 5
        %v819 = vrot.slane %v818, 4
        %v820 = vrot.slane %v281, 5
        %v821 = vsel %vm726, %v819, %v820
        %v822 = vrot.slane %v820, 4
        %v823 = vrot.slane %v282, 5
        %v824 = vsel %vm726, %v822, %v823
        %v825 = vrot.slane %v283, 5
        %v826 = vrot.slane %v825, 4
        %v827 = vrot.slane %v284, 5
        %v828 = vsel %vm726, %v826, %v827
        %v829 = vrot.slane %v827, 4
        %v830 = vrot.slane %v285, 5
        %v831 = vsel %vm726, %v829, %v830
        %v832 = vrot.slane %v286, 5
        %v833 = vrot.slane %v832, 4
        %v834 = vrot.slane %v287, 5
        %v835 = vsel %vm726, %v833, %v834
        %v836 = vrot.slane %v834, 4
        %v837 = vrot.slane %v288, 5
        %v838 = vsel %vm726, %v836, %v837
        %s839 = sadd.s32 %s237, 1
        %s840 = smul.u32 %s839, 3
        %s841 = smul.addr %s840, 4
        %s842 = scalar_lea.vmem %s233, %s841
        %v843 = vld [vmem:[%s842] sm:$0xf]
        %v844 = vld [vmem:[%s842 + $0x4] sm:$0xf]
        %v845 = vld [vmem:[%s842 + $0x8] sm:$0x1]
        %v846 = vld [vmem:[%s842 + $0xc] sm:$0xf]
        %v847 = vld [vmem:[%s842 + $0x10] sm:$0xf]
        %v848 = vld [vmem:[%s842 + $0x14] sm:$0x1]
        %v849 = vld [vmem:[%s842 + $0x18] sm:$0xf]
        %v850 = vld [vmem:[%s842 + $0x1c] sm:$0xf]
        %v851 = vld [vmem:[%s842 + $0x20] sm:$0x1]
        %v852 = vld [vmem:[%s842 + $0x24] sm:$0xf]
        %v853 = vld [vmem:[%s842 + $0x28] sm:$0xf]
        %v854 = vld [vmem:[%s842 + $0x2c] sm:$0x1]
        %v855 = vld [vmem:[%s842 + $0x30] sm:$0xf]
        %v856 = vld [vmem:[%s842 + $0x34] sm:$0xf]
        %v857 = vld [vmem:[%s842 + $0x38] sm:$0x1]
        %v858 = vld [vmem:[%s842 + $0x3c] sm:$0xf]
        %v859 = vld [vmem:[%s842 + $0x40] sm:$0xf]
        %v860 = vld [vmem:[%s842 + $0x44] sm:$0x1]
        %v861 = vld [vmem:[%s842 + $0x48] sm:$0xf]
        %v862 = vld [vmem:[%s842 + $0x4c] sm:$0xf]
        %v863 = vld [vmem:[%s842 + $0x50] sm:$0x1]
        %v864 = vld [vmem:[%s842 + $0x54] sm:$0xf]
        %v865 = vld [vmem:[%s842 + $0x58] sm:$0xf]
        %v866 = vld [vmem:[%s842 + $0x5c] sm:$0x1]
        %v867 = vld [vmem:[%s842 + $0x60] sm:$0xf]
        %v868 = vld [vmem:[%s842 + $0x64] sm:$0xf]
        %v869 = vld [vmem:[%s842 + $0x68] sm:$0x1]
        %v870 = vld [vmem:[%s842 + $0x6c] sm:$0xf]
        %v871 = vld [vmem:[%s842 + $0x70] sm:$0xf]
        %v872 = vld [vmem:[%s842 + $0x74] sm:$0x1]
        %v873 = vld [vmem:[%s842 + $0x78] sm:$0xf]
        %v874 = vld [vmem:[%s842 + $0x7c] sm:$0xf]
        %v875 = vld [vmem:[%s842 + $0x80] sm:$0x1]
        %v876 = vld [vmem:[%s842 + $0x84] sm:$0xf]
        %v877 = vld [vmem:[%s842 + $0x88] sm:$0xf]
        %v878 = vld [vmem:[%s842 + $0x8c] sm:$0x1]
        %v879 = vld [vmem:[%s842 + $0x90] sm:$0xf]
        %v880 = vld [vmem:[%s842 + $0x94] sm:$0xf]
        %v881 = vld [vmem:[%s842 + $0x98] sm:$0x1]
        %v882 = vld [vmem:[%s842 + $0x9c] sm:$0xf]
        %v883 = vld [vmem:[%s842 + $0xa0] sm:$0xf]
        %v884 = vld [vmem:[%s842 + $0xa4] sm:$0x1]
        %v885 = vld [vmem:[%s842 + $0xa8] sm:$0xf]
        %v886 = vld [vmem:[%s842 + $0xac] sm:$0xf]
        %v887 = vld [vmem:[%s842 + $0xb0] sm:$0x1]
        %v888 = vld [vmem:[%s842 + $0xb4] sm:$0xf]
        %v889 = vld [vmem:[%s842 + $0xb8] sm:$0xf]
        %v890 = vld [vmem:[%s842 + $0xbc] sm:$0x1]
        %v892 = vshrl.u32 %v843, 16
        %v894 = vrot.slane %v892, 4
        %v895 = vshll.u32 %v843, 16
        %v897 = vrot.slane %v895, 5
        %v898 = vor.u32 %v894, %v897
        %v899 = vrot.slane %v898, 4
        %v901 = vshll.u32 %v844, 16
        %v903 = vrot.slane %v901, 5
        %v904 = vsel %vm291, %v899, %v903
        %v905 = vshrl.u32 %v844, 16
        %v907 = vrot.slane %v905, 4
        %v908 = vor.u32 %v907, %v903
        %v909 = vrot.slane %v908, 4
        %v911 = vshll.u32 %v845, 16
        %v913 = vrot.slane %v911, 5
        %v914 = vsel %vm291, %v909, %v913
        %v916 = vshrl.u32 %v846, 16
        %v918 = vrot.slane %v916, 4
        %v919 = vshll.u32 %v846, 16
        %v921 = vrot.slane %v919, 5
        %v922 = vor.u32 %v918, %v921
        %v923 = vrot.slane %v922, 4
        %v925 = vshll.u32 %v847, 16
        %v927 = vrot.slane %v925, 5
        %v928 = vsel %vm291, %v923, %v927
        %v929 = vshrl.u32 %v847, 16
        %v931 = vrot.slane %v929, 4
        %v932 = vor.u32 %v931, %v927
        %v933 = vrot.slane %v932, 4
        %v935 = vshll.u32 %v848, 16
        %v937 = vrot.slane %v935, 5
        %v938 = vsel %vm291, %v933, %v937
        %v940 = vshrl.u32 %v849, 16
        %v942 = vrot.slane %v940, 4
        %v943 = vshll.u32 %v849, 16
        %v945 = vrot.slane %v943, 5
        %v946 = vor.u32 %v942, %v945
        %v947 = vrot.slane %v946, 4
        %v949 = vshll.u32 %v850, 16
        %v951 = vrot.slane %v949, 5
        %v952 = vsel %vm291, %v947, %v951
        %v953 = vshrl.u32 %v850, 16
        %v955 = vrot.slane %v953, 4
        %v956 = vor.u32 %v955, %v951
        %v957 = vrot.slane %v956, 4
        %v959 = vshll.u32 %v851, 16
        %v961 = vrot.slane %v959, 5
        %v962 = vsel %vm291, %v957, %v961
        %v964 = vshrl.u32 %v852, 16
        %v966 = vrot.slane %v964, 4
        %v967 = vshll.u32 %v852, 16
        %v969 = vrot.slane %v967, 5
        %v970 = vor.u32 %v966, %v969
        %v971 = vrot.slane %v970, 4
        %v973 = vshll.u32 %v853, 16
        %v975 = vrot.slane %v973, 5
        %v976 = vsel %vm291, %v971, %v975
        %v977 = vshrl.u32 %v853, 16
        %v979 = vrot.slane %v977, 4
        %v980 = vor.u32 %v979, %v975
        %v981 = vrot.slane %v980, 4
        %v983 = vshll.u32 %v854, 16
        %v985 = vrot.slane %v983, 5
        %v986 = vsel %vm291, %v981, %v985
        %v988 = vshrl.u32 %v855, 16
        %v990 = vrot.slane %v988, 4
        %v991 = vshll.u32 %v855, 16
        %v993 = vrot.slane %v991, 5
        %v994 = vor.u32 %v990, %v993
        %v995 = vrot.slane %v994, 4
        %v997 = vshll.u32 %v856, 16
        %v999 = vrot.slane %v997, 5
        %v1000 = vsel %vm291, %v995, %v999
        %v1001 = vshrl.u32 %v856, 16
        %v1003 = vrot.slane %v1001, 4
        %v1004 = vor.u32 %v1003, %v999
        %v1005 = vrot.slane %v1004, 4
        %v1007 = vshll.u32 %v857, 16
        %v1009 = vrot.slane %v1007, 5
        %v1010 = vsel %vm291, %v1005, %v1009
        %v1012 = vshrl.u32 %v858, 16
        %v1014 = vrot.slane %v1012, 4
        %v1015 = vshll.u32 %v858, 16
        %v1017 = vrot.slane %v1015, 5
        %v1018 = vor.u32 %v1014, %v1017
        %v1019 = vrot.slane %v1018, 4
        %v1021 = vshll.u32 %v859, 16
        %v1023 = vrot.slane %v1021, 5
        %v1024 = vsel %vm291, %v1019, %v1023
        %v1025 = vshrl.u32 %v859, 16
        %v1027 = vrot.slane %v1025, 4
        %v1028 = vor.u32 %v1027, %v1023
        %v1029 = vrot.slane %v1028, 4
        %v1031 = vshll.u32 %v860, 16
        %v1033 = vrot.slane %v1031, 5
        %v1034 = vsel %vm291, %v1029, %v1033
        %v1036 = vshrl.u32 %v861, 16
        %v1038 = vrot.slane %v1036, 4
        %v1039 = vshll.u32 %v861, 16
        %v1041 = vrot.slane %v1039, 5
        %v1042 = vor.u32 %v1038, %v1041
        %v1043 = vrot.slane %v1042, 4
        %v1045 = vshll.u32 %v862, 16
        %v1047 = vrot.slane %v1045, 5
        %v1048 = vsel %vm291, %v1043, %v1047
        %v1049 = vshrl.u32 %v862, 16
        %v1051 = vrot.slane %v1049, 4
        %v1052 = vor.u32 %v1051, %v1047
        %v1053 = vrot.slane %v1052, 4
        %v1055 = vshll.u32 %v863, 16
        %v1057 = vrot.slane %v1055, 5
        %v1058 = vsel %vm291, %v1053, %v1057
        %v1060 = vshrl.u32 %v864, 16
        %v1062 = vrot.slane %v1060, 4
        %v1063 = vshll.u32 %v864, 16
        %v1065 = vrot.slane %v1063, 5
        %v1066 = vor.u32 %v1062, %v1065
        %v1067 = vrot.slane %v1066, 4
        %v1069 = vshll.u32 %v865, 16
        %v1071 = vrot.slane %v1069, 5
        %v1072 = vsel %vm291, %v1067, %v1071
        %v1073 = vshrl.u32 %v865, 16
        %v1075 = vrot.slane %v1073, 4
        %v1076 = vor.u32 %v1075, %v1071
        %v1077 = vrot.slane %v1076, 4
        %v1079 = vshll.u32 %v866, 16
        %v1081 = vrot.slane %v1079, 5
        %v1082 = vsel %vm291, %v1077, %v1081
        %v1084 = vshrl.u32 %v867, 16
        %v1086 = vrot.slane %v1084, 4
        %v1087 = vshll.u32 %v867, 16
        %v1089 = vrot.slane %v1087, 5
        %v1090 = vor.u32 %v1086, %v1089
        %v1091 = vrot.slane %v1090, 4
        %v1093 = vshll.u32 %v868, 16
        %v1095 = vrot.slane %v1093, 5
        %v1096 = vsel %vm291, %v1091, %v1095
        %v1097 = vshrl.u32 %v868, 16
        %v1099 = vrot.slane %v1097, 4
        %v1100 = vor.u32 %v1099, %v1095
        %v1101 = vrot.slane %v1100, 4
        %v1103 = vshll.u32 %v869, 16
        %v1105 = vrot.slane %v1103, 5
        %v1106 = vsel %vm291, %v1101, %v1105
        %v1108 = vshrl.u32 %v870, 16
        %v1110 = vrot.slane %v1108, 4
        %v1111 = vshll.u32 %v870, 16
        %v1113 = vrot.slane %v1111, 5
        %v1114 = vor.u32 %v1110, %v1113
        %v1115 = vrot.slane %v1114, 4
        %v1117 = vshll.u32 %v871, 16
        %v1119 = vrot.slane %v1117, 5
        %v1120 = vsel %vm291, %v1115, %v1119
        %v1121 = vshrl.u32 %v871, 16
        %v1123 = vrot.slane %v1121, 4
        %v1124 = vor.u32 %v1123, %v1119
        %v1125 = vrot.slane %v1124, 4
        %v1127 = vshll.u32 %v872, 16
        %v1129 = vrot.slane %v1127, 5
        %v1130 = vsel %vm291, %v1125, %v1129
        %v1132 = vshrl.u32 %v873, 16
        %v1134 = vrot.slane %v1132, 4
        %v1135 = vshll.u32 %v873, 16
        %v1137 = vrot.slane %v1135, 5
        %v1138 = vor.u32 %v1134, %v1137
        %v1139 = vrot.slane %v1138, 4
        %v1141 = vshll.u32 %v874, 16
        %v1143 = vrot.slane %v1141, 5
        %v1144 = vsel %vm291, %v1139, %v1143
        %v1145 = vshrl.u32 %v874, 16
        %v1147 = vrot.slane %v1145, 4
        %v1148 = vor.u32 %v1147, %v1143
        %v1149 = vrot.slane %v1148, 4
        %v1151 = vshll.u32 %v875, 16
        %v1153 = vrot.slane %v1151, 5
        %v1154 = vsel %vm291, %v1149, %v1153
        %v1156 = vshrl.u32 %v876, 16
        %v1158 = vrot.slane %v1156, 4
        %v1159 = vshll.u32 %v876, 16
        %v1161 = vrot.slane %v1159, 5
        %v1162 = vor.u32 %v1158, %v1161
        %v1163 = vrot.slane %v1162, 4
        %v1165 = vshll.u32 %v877, 16
        %v1167 = vrot.slane %v1165, 5
        %v1168 = vsel %vm291, %v1163, %v1167
        %v1169 = vshrl.u32 %v877, 16
        %v1171 = vrot.slane %v1169, 4
        %v1172 = vor.u32 %v1171, %v1167
        %v1173 = vrot.slane %v1172, 4
        %v1175 = vshll.u32 %v878, 16
        %v1177 = vrot.slane %v1175, 5
        %v1178 = vsel %vm291, %v1173, %v1177
        %v1180 = vshrl.u32 %v879, 16
        %v1182 = vrot.slane %v1180, 4
        %v1183 = vshll.u32 %v879, 16
        %v1185 = vrot.slane %v1183, 5
        %v1186 = vor.u32 %v1182, %v1185
        %v1187 = vrot.slane %v1186, 4
        %v1189 = vshll.u32 %v880, 16
        %v1191 = vrot.slane %v1189, 5
        %v1192 = vsel %vm291, %v1187, %v1191
        %v1193 = vshrl.u32 %v880, 16
        %v1195 = vrot.slane %v1193, 4
        %v1196 = vor.u32 %v1195, %v1191
        %v1197 = vrot.slane %v1196, 4
        %v1199 = vshll.u32 %v881, 16
        %v1201 = vrot.slane %v1199, 5
        %v1202 = vsel %vm291, %v1197, %v1201
        %v1204 = vshrl.u32 %v882, 16
        %v1206 = vrot.slane %v1204, 4
        %v1207 = vshll.u32 %v882, 16
        %v1209 = vrot.slane %v1207, 5
        %v1210 = vor.u32 %v1206, %v1209
        %v1211 = vrot.slane %v1210, 4
        %v1213 = vshll.u32 %v883, 16
        %v1215 = vrot.slane %v1213, 5
        %v1216 = vsel %vm291, %v1211, %v1215
        %v1217 = vshrl.u32 %v883, 16
        %v1219 = vrot.slane %v1217, 4
        %v1220 = vor.u32 %v1219, %v1215
        %v1221 = vrot.slane %v1220, 4
        %v1223 = vshll.u32 %v884, 16
        %v1225 = vrot.slane %v1223, 5
        %v1226 = vsel %vm291, %v1221, %v1225
        %v1228 = vshrl.u32 %v885, 16
        %v1230 = vrot.slane %v1228, 4
        %v1231 = vshll.u32 %v885, 16
        %v1233 = vrot.slane %v1231, 5
        %v1234 = vor.u32 %v1230, %v1233
        %v1235 = vrot.slane %v1234, 4
        %v1237 = vshll.u32 %v886, 16
        %v1239 = vrot.slane %v1237, 5
        %v1240 = vsel %vm291, %v1235, %v1239
        %v1241 = vshrl.u32 %v886, 16
        %v1243 = vrot.slane %v1241, 4
        %v1244 = vor.u32 %v1243, %v1239
        %v1245 = vrot.slane %v1244, 4
        %v1247 = vshll.u32 %v887, 16
        %v1249 = vrot.slane %v1247, 5
        %v1250 = vsel %vm291, %v1245, %v1249
        %v1252 = vshrl.u32 %v888, 16
        %v1254 = vrot.slane %v1252, 4
        %v1255 = vshll.u32 %v888, 16
        %v1257 = vrot.slane %v1255, 5
        %v1258 = vor.u32 %v1254, %v1257
        %v1259 = vrot.slane %v1258, 4
        %v1261 = vshll.u32 %v889, 16
        %v1263 = vrot.slane %v1261, 5
        %v1264 = vsel %vm291, %v1259, %v1263
        %v1265 = vshrl.u32 %v889, 16
        %v1267 = vrot.slane %v1265, 4
        %v1268 = vor.u32 %v1267, %v1263
        %v1269 = vrot.slane %v1268, 4
        %v1271 = vshll.u32 %v890, 16
        %v1273 = vrot.slane %v1271, 5
        %v1274 = vsel %vm291, %v1269, %v1273
        %v1323 = vrot.slane %v843, 5
        %v1324 = vrot.slane %v1323, 4
        %v1325 = vrot.slane %v844, 5
        %v1326 = vsel %vm726, %v1324, %v1325
        %v1327 = vrot.slane %v1325, 4
        %v1328 = vrot.slane %v845, 5
        %v1329 = vsel %vm726, %v1327, %v1328
        %v1330 = vrot.slane %v846, 5
        %v1331 = vrot.slane %v1330, 4
        %v1332 = vrot.slane %v847, 5
        %v1333 = vsel %vm726, %v1331, %v1332
        %v1334 = vrot.slane %v1332, 4
        %v1335 = vrot.slane %v848, 5
        %v1336 = vsel %vm726, %v1334, %v1335
        %v1337 = vrot.slane %v849, 5
        %v1338 = vrot.slane %v1337, 4
        %v1339 = vrot.slane %v850, 5
        %v1340 = vsel %vm726, %v1338, %v1339
        %v1341 = vrot.slane %v1339, 4
        %v1342 = vrot.slane %v851, 5
        %v1343 = vsel %vm726, %v1341, %v1342
        %v1344 = vrot.slane %v852, 5
        %v1345 = vrot.slane %v1344, 4
        %v1346 = vrot.slane %v853, 5
        %v1347 = vsel %vm726, %v1345, %v1346
        %v1348 = vrot.slane %v1346, 4
        %v1349 = vrot.slane %v854, 5
        %v1350 = vsel %vm726, %v1348, %v1349
        %v1351 = vrot.slane %v855, 5
        %v1352 = vrot.slane %v1351, 4
        %v1353 = vrot.slane %v856, 5
        %v1354 = vsel %vm726, %v1352, %v1353
        %v1355 = vrot.slane %v1353, 4
        %v1356 = vrot.slane %v857, 5
        %v1357 = vsel %vm726, %v1355, %v1356
        %v1358 = vrot.slane %v858, 5
        %v1359 = vrot.slane %v1358, 4
        %v1360 = vrot.slane %v859, 5
        %v1361 = vsel %vm726, %v1359, %v1360
        %v1362 = vrot.slane %v1360, 4
        %v1363 = vrot.slane %v860, 5
        %v1364 = vsel %vm726, %v1362, %v1363
        %v1365 = vrot.slane %v861, 5
        %v1366 = vrot.slane %v1365, 4
        %v1367 = vrot.slane %v862, 5
        %v1368 = vsel %vm726, %v1366, %v1367
        %v1369 = vrot.slane %v1367, 4
        %v1370 = vrot.slane %v863, 5
        %v1371 = vsel %vm726, %v1369, %v1370
        %v1372 = vrot.slane %v864, 5
        %v1373 = vrot.slane %v1372, 4
        %v1374 = vrot.slane %v865, 5
        %v1375 = vsel %vm726, %v1373, %v1374
        %v1376 = vrot.slane %v1374, 4
        %v1377 = vrot.slane %v866, 5
        %v1378 = vsel %vm726, %v1376, %v1377
        %v1379 = vrot.slane %v867, 5
        %v1380 = vrot.slane %v1379, 4
        %v1381 = vrot.slane %v868, 5
        %v1382 = vsel %vm726, %v1380, %v1381
        %v1383 = vrot.slane %v1381, 4
        %v1384 = vrot.slane %v869, 5
        %v1385 = vsel %vm726, %v1383, %v1384
        %v1386 = vrot.slane %v870, 5
        %v1387 = vrot.slane %v1386, 4
        %v1388 = vrot.slane %v871, 5
        %v1389 = vsel %vm726, %v1387, %v1388
        %v1390 = vrot.slane %v1388, 4
        %v1391 = vrot.slane %v872, 5
        %v1392 = vsel %vm726, %v1390, %v1391
        %v1393 = vrot.slane %v873, 5
        %v1394 = vrot.slane %v1393, 4
        %v1395 = vrot.slane %v874, 5
        %v1396 = vsel %vm726, %v1394, %v1395
        %v1397 = vrot.slane %v1395, 4
        %v1398 = vrot.slane %v875, 5
        %v1399 = vsel %vm726, %v1397, %v1398
        %v1400 = vrot.slane %v876, 5
        %v1401 = vrot.slane %v1400, 4
        %v1402 = vrot.slane %v877, 5
        %v1403 = vsel %vm726, %v1401, %v1402
        %v1404 = vrot.slane %v1402, 4
        %v1405 = vrot.slane %v878, 5
        %v1406 = vsel %vm726, %v1404, %v1405
        %v1407 = vrot.slane %v879, 5
        %v1408 = vrot.slane %v1407, 4
        %v1409 = vrot.slane %v880, 5
        %v1410 = vsel %vm726, %v1408, %v1409
        %v1411 = vrot.slane %v1409, 4
        %v1412 = vrot.slane %v881, 5
        %v1413 = vsel %vm726, %v1411, %v1412
        %v1414 = vrot.slane %v882, 5
        %v1415 = vrot.slane %v1414, 4
        %v1416 = vrot.slane %v883, 5
        %v1417 = vsel %vm726, %v1415, %v1416
        %v1418 = vrot.slane %v1416, 4
        %v1419 = vrot.slane %v884, 5
        %v1420 = vsel %vm726, %v1418, %v1419
        %v1421 = vrot.slane %v885, 5
        %v1422 = vrot.slane %v1421, 4
        %v1423 = vrot.slane %v886, 5
        %v1424 = vsel %vm726, %v1422, %v1423
        %v1425 = vrot.slane %v1423, 4
        %v1426 = vrot.slane %v887, 5
        %v1427 = vsel %vm726, %v1425, %v1426
        %v1428 = vrot.slane %v888, 5
        %v1429 = vrot.slane %v1428, 4
        %v1430 = vrot.slane %v889, 5
        %v1431 = vsel %vm726, %v1429, %v1430
        %v1432 = vrot.slane %v1430, 4
        %v1433 = vrot.slane %v890, 5
        %v1434 = vsel %vm726, %v1432, %v1433
        %v1435 = vunpack.c.l.b16 %v241
        %v1436 = vunpack.c.l.b16 %v242
        %v1437 = vunpack.c.l.b16 %v244
        %v1438 = vunpack.c.l.b16 %v245
        %v1439 = vunpack.c.l.b16 %v247
        %v1440 = vunpack.c.l.b16 %v248
        %v1441 = vunpack.c.l.b16 %v250
        %v1442 = vunpack.c.l.b16 %v251
        %v1443 = vunpack.c.l.b16 %v253
        %v1444 = vunpack.c.l.b16 %v254
        %v1445 = vunpack.c.l.b16 %v256
        %v1446 = vunpack.c.l.b16 %v257
        %v1447 = vunpack.c.l.b16 %v259
        %v1448 = vunpack.c.l.b16 %v260
        %v1449 = vunpack.c.l.b16 %v262
        %v1450 = vunpack.c.l.b16 %v263
        %v1451 = vunpack.c.l.b16 %v265
        %v1452 = vunpack.c.l.b16 %v266
        %v1453 = vunpack.c.l.b16 %v268
        %v1454 = vunpack.c.l.b16 %v269
        %v1455 = vunpack.c.l.b16 %v271
        %v1456 = vunpack.c.l.b16 %v272
        %v1457 = vunpack.c.l.b16 %v274
        %v1458 = vunpack.c.l.b16 %v275
        %v1459 = vunpack.c.l.b16 %v277
        %v1460 = vunpack.c.l.b16 %v278
        %v1461 = vunpack.c.l.b16 %v280
        %v1462 = vunpack.c.l.b16 %v281
        %v1463 = vunpack.c.l.b16 %v283
        %v1464 = vunpack.c.l.b16 %v284
        %v1465 = vunpack.c.l.b16 %v286
        %v1466 = vunpack.c.l.b16 %v287
        %v1467 = vpack.c.b16 %v1436, %v1435
        %v1468 = vpack.c.b16 %v1438, %v1437
        %v1469 = vpack.c.b16 %v1440, %v1439
        %v1470 = vpack.c.b16 %v1442, %v1441
        %v1471 = vpack.c.b16 %v1444, %v1443
        %v1472 = vpack.c.b16 %v1446, %v1445
        %v1473 = vpack.c.b16 %v1448, %v1447
        %v1474 = vpack.c.b16 %v1450, %v1449
        %v1475 = vpack.c.b16 %v1452, %v1451
        %v1476 = vpack.c.b16 %v1454, %v1453
        %v1477 = vpack.c.b16 %v1456, %v1455
        %v1478 = vpack.c.b16 %v1458, %v1457
        %v1479 = vpack.c.b16 %v1460, %v1459
        %v1480 = vpack.c.b16 %v1462, %v1461
        %v1481 = vpack.c.b16 %v1464, %v1463
        %v1482 = vpack.c.b16 %v1466, %v1465
        %v1483 = vunpack.c.l.b16 %v305
        %v1484 = vunpack.c.l.b16 %v315
        %v1485 = vunpack.c.l.b16 %v329
        %v1486 = vunpack.c.l.b16 %v339
        %v1487 = vunpack.c.l.b16 %v353
        %v1488 = vunpack.c.l.b16 %v363
        %v1489 = vunpack.c.l.b16 %v377
        %v1490 = vunpack.c.l.b16 %v387
        %v1491 = vunpack.c.l.b16 %v401
        %v1492 = vunpack.c.l.b16 %v411
        %v1493 = vunpack.c.l.b16 %v425
        %v1494 = vunpack.c.l.b16 %v435
        %v1495 = vunpack.c.l.b16 %v449
        %v1496 = vunpack.c.l.b16 %v459
        %v1497 = vunpack.c.l.b16 %v473
        %v1498 = vunpack.c.l.b16 %v483
        %v1499 = vunpack.c.l.b16 %v497
        %v1500 = vunpack.c.l.b16 %v507
        %v1501 = vunpack.c.l.b16 %v521
        %v1502 = vunpack.c.l.b16 %v531
        %v1503 = vunpack.c.l.b16 %v545
        %v1504 = vunpack.c.l.b16 %v555
        %v1505 = vunpack.c.l.b16 %v569
        %v1506 = vunpack.c.l.b16 %v579
        %v1507 = vunpack.c.l.b16 %v593
        %v1508 = vunpack.c.l.b16 %v603
        %v1509 = vunpack.c.l.b16 %v617
        %v1510 = vunpack.c.l.b16 %v627
        %v1511 = vunpack.c.l.b16 %v641
        %v1512 = vunpack.c.l.b16 %v651
        %v1513 = vunpack.c.l.b16 %v665
        %v1514 = vunpack.c.l.b16 %v675
        %v1515 = vpack.c.b16 %v1484, %v1483
        %v1516 = vpack.c.b16 %v1486, %v1485
        %v1517 = vpack.c.b16 %v1488, %v1487
        %v1518 = vpack.c.b16 %v1490, %v1489
        %v1519 = vpack.c.b16 %v1492, %v1491
        %v1520 = vpack.c.b16 %v1494, %v1493
        %v1521 = vpack.c.b16 %v1496, %v1495
        %v1522 = vpack.c.b16 %v1498, %v1497
        %v1523 = vpack.c.b16 %v1500, %v1499
        %v1524 = vpack.c.b16 %v1502, %v1501
        %v1525 = vpack.c.b16 %v1504, %v1503
        %v1526 = vpack.c.b16 %v1506, %v1505
        %v1527 = vpack.c.b16 %v1508, %v1507
        %v1528 = vpack.c.b16 %v1510, %v1509
        %v1529 = vpack.c.b16 %v1512, %v1511
        %v1530 = vpack.c.b16 %v1514, %v1513
        %1531 = vrot.lane.b32.xlu0 %v1515, 4
        %v1532 = vpop.permute.xlu0 %1531
        %1533 = vrot.lane.b32.xlu0 %v1516, 4
        %v1534 = vpop.permute.xlu0 %1533
        %1535 = vrot.lane.b32.xlu0 %v1517, 4
        %v1536 = vpop.permute.xlu0 %1535
        %1537 = vrot.lane.b32.xlu0 %v1518, 4
        %v1538 = vpop.permute.xlu0 %1537
        %1539 = vrot.lane.b32.xlu0 %v1519, 4
        %v1540 = vpop.permute.xlu0 %1539
        %1541 = vrot.lane.b32.xlu0 %v1520, 4
        %v1542 = vpop.permute.xlu0 %1541
        %1543 = vrot.lane.b32.xlu0 %v1521, 4
        %v1544 = vpop.permute.xlu0 %1543
        %1545 = vrot.lane.b32.xlu0 %v1522, 4
        %v1546 = vpop.permute.xlu0 %1545
        %1547 = vrot.lane.b32.xlu0 %v1523, 4
        %v1548 = vpop.permute.xlu0 %1547
        %1549 = vrot.lane.b32.xlu0 %v1524, 4
        %v1550 = vpop.permute.xlu0 %1549
        %1551 = vrot.lane.b32.xlu0 %v1525, 4
        %v1552 = vpop.permute.xlu0 %1551
        %1553 = vrot.lane.b32.xlu0 %v1526, 4
        %v1554 = vpop.permute.xlu0 %1553
        %1555 = vrot.lane.b32.xlu0 %v1527, 4
        %v1556 = vpop.permute.xlu0 %1555
        %1557 = vrot.lane.b32.xlu0 %v1528, 4
        %v1558 = vpop.permute.xlu0 %1557
        %1559 = vrot.lane.b32.xlu0 %v1529, 4
        %v1560 = vpop.permute.xlu0 %1559
        %1561 = vrot.lane.b32.xlu0 %v1530, 4
        %v1562 = vpop.permute.xlu0 %1561
        %v1563 = vunpack.c.l.b16 %v843
        %v1564 = vunpack.c.l.b16 %v844
        %v1565 = vunpack.c.l.b16 %v846
        %v1566 = vunpack.c.l.b16 %v847
        %v1567 = vunpack.c.l.b16 %v849
        %v1568 = vunpack.c.l.b16 %v850
        %v1569 = vunpack.c.l.b16 %v852
        %v1570 = vunpack.c.l.b16 %v853
        %v1571 = vunpack.c.l.b16 %v855
        %v1572 = vunpack.c.l.b16 %v856
        %v1573 = vunpack.c.l.b16 %v858
        %v1574 = vunpack.c.l.b16 %v859
        %v1575 = vunpack.c.l.b16 %v861
        %v1576 = vunpack.c.l.b16 %v862
        %v1577 = vunpack.c.l.b16 %v864
        %v1578 = vunpack.c.l.b16 %v865
        %v1579 = vunpack.c.l.b16 %v867
        %v1580 = vunpack.c.l.b16 %v868
        %v1581 = vunpack.c.l.b16 %v870
        %v1582 = vunpack.c.l.b16 %v871
        %v1583 = vunpack.c.l.b16 %v873
        %v1584 = vunpack.c.l.b16 %v874
        %v1585 = vunpack.c.l.b16 %v876
        %v1586 = vunpack.c.l.b16 %v877
        %v1587 = vunpack.c.l.b16 %v879
        %v1588 = vunpack.c.l.b16 %v880
        %v1589 = vunpack.c.l.b16 %v882
        %v1590 = vunpack.c.l.b16 %v883
        %v1591 = vunpack.c.l.b16 %v885
        %v1592 = vunpack.c.l.b16 %v886
        %v1593 = vunpack.c.l.b16 %v888
        %v1594 = vunpack.c.l.b16 %v889
        %v1595 = vpack.c.b16 %v1564, %v1563
        %v1596 = vpack.c.b16 %v1566, %v1565
        %v1597 = vpack.c.b16 %v1568, %v1567
        %v1598 = vpack.c.b16 %v1570, %v1569
        %v1599 = vpack.c.b16 %v1572, %v1571
        %v1600 = vpack.c.b16 %v1574, %v1573
        %v1601 = vpack.c.b16 %v1576, %v1575
        %v1602 = vpack.c.b16 %v1578, %v1577
        %v1603 = vpack.c.b16 %v1580, %v1579
        %v1604 = vpack.c.b16 %v1582, %v1581
        %v1605 = vpack.c.b16 %v1584, %v1583
        %v1606 = vpack.c.b16 %v1586, %v1585
        %v1607 = vpack.c.b16 %v1588, %v1587
        %v1608 = vpack.c.b16 %v1590, %v1589
        %v1609 = vpack.c.b16 %v1592, %v1591
        %v1610 = vpack.c.b16 %v1594, %v1593
        %1611 = vrot.lane.b32.xlu0 %v1595, 8
        %v1612 = vpop.permute.xlu0 %1611
        %1613 = vrot.lane.b32.xlu0 %v1596, 8
        %v1614 = vpop.permute.xlu0 %1613
        %1615 = vrot.lane.b32.xlu0 %v1597, 8
        %v1616 = vpop.permute.xlu0 %1615
        %1617 = vrot.lane.b32.xlu0 %v1598, 8
        %v1618 = vpop.permute.xlu0 %1617
        %1619 = vrot.lane.b32.xlu0 %v1599, 8
        %v1620 = vpop.permute.xlu0 %1619
        %1621 = vrot.lane.b32.xlu0 %v1600, 8
        %v1622 = vpop.permute.xlu0 %1621
        %1623 = vrot.lane.b32.xlu0 %v1601, 8
        %v1624 = vpop.permute.xlu0 %1623
        %1625 = vrot.lane.b32.xlu0 %v1602, 8
        %v1626 = vpop.permute.xlu0 %1625
        %1627 = vrot.lane.b32.xlu0 %v1603, 8
        %v1628 = vpop.permute.xlu0 %1627
        %1629 = vrot.lane.b32.xlu0 %v1604, 8
        %v1630 = vpop.permute.xlu0 %1629
        %1631 = vrot.lane.b32.xlu0 %v1605, 8
        %v1632 = vpop.permute.xlu0 %1631
        %1633 = vrot.lane.b32.xlu0 %v1606, 8
        %v1634 = vpop.permute.xlu0 %1633
        %1635 = vrot.lane.b32.xlu0 %v1607, 8
        %v1636 = vpop.permute.xlu0 %1635
        %1637 = vrot.lane.b32.xlu0 %v1608, 8
        %v1638 = vpop.permute.xlu0 %1637
        %1639 = vrot.lane.b32.xlu0 %v1609, 8
        %v1640 = vpop.permute.xlu0 %1639
        %1641 = vrot.lane.b32.xlu0 %v1610, 8
        %v1642 = vpop.permute.xlu0 %1641
        %v1643 = vunpack.c.l.b16 %v904
        %v1644 = vunpack.c.l.b16 %v914
        %v1645 = vunpack.c.l.b16 %v928
        %v1646 = vunpack.c.l.b16 %v938
        %v1647 = vunpack.c.l.b16 %v952
        %v1648 = vunpack.c.l.b16 %v962
        %v1649 = vunpack.c.l.b16 %v976
        %v1650 = vunpack.c.l.b16 %v986
        %v1651 = vunpack.c.l.b16 %v1000
        %v1652 = vunpack.c.l.b16 %v1010
        %v1653 = vunpack.c.l.b16 %v1024
        %v1654 = vunpack.c.l.b16 %v1034
        %v1655 = vunpack.c.l.b16 %v1048
        %v1656 = vunpack.c.l.b16 %v1058
        %v1657 = vunpack.c.l.b16 %v1072
        %v1658 = vunpack.c.l.b16 %v1082
        %v1659 = vunpack.c.l.b16 %v1096
        %v1660 = vunpack.c.l.b16 %v1106
        %v1661 = vunpack.c.l.b16 %v1120
        %v1662 = vunpack.c.l.b16 %v1130
        %v1663 = vunpack.c.l.b16 %v1144
        %v1664 = vunpack.c.l.b16 %v1154
        %v1665 = vunpack.c.l.b16 %v1168
        %v1666 = vunpack.c.l.b16 %v1178
        %v1667 = vunpack.c.l.b16 %v1192
        %v1668 = vunpack.c.l.b16 %v1202
        %v1669 = vunpack.c.l.b16 %v1216
        %v1670 = vunpack.c.l.b16 %v1226
        %v1671 = vunpack.c.l.b16 %v1240
        %v1672 = vunpack.c.l.b16 %v1250
        %v1673 = vunpack.c.l.b16 %v1264
        %v1674 = vunpack.c.l.b16 %v1274
        %v1675 = vpack.c.b16 %v1644, %v1643
        %v1676 = vpack.c.b16 %v1646, %v1645
        %v1677 = vpack.c.b16 %v1648, %v1647
        %v1678 = vpack.c.b16 %v1650, %v1649
        %v1679 = vpack.c.b16 %v1652, %v1651
        %v1680 = vpack.c.b16 %v1654, %v1653
        %v1681 = vpack.c.b16 %v1656, %v1655
        %v1682 = vpack.c.b16 %v1658, %v1657
        %v1683 = vpack.c.b16 %v1660, %v1659
        %v1684 = vpack.c.b16 %v1662, %v1661
        %v1685 = vpack.c.b16 %v1664, %v1663
        %v1686 = vpack.c.b16 %v1666, %v1665
        %v1687 = vpack.c.b16 %v1668, %v1667
        %v1688 = vpack.c.b16 %v1670, %v1669
        %v1689 = vpack.c.b16 %v1672, %v1671
        %v1690 = vpack.c.b16 %v1674, %v1673
        %1691 = vrot.lane.b32.xlu0 %v1675, 12
        %v1692 = vpop.permute.xlu0 %1691
        %1693 = vrot.lane.b32.xlu0 %v1676, 12
        %v1694 = vpop.permute.xlu0 %1693
        %1695 = vrot.lane.b32.xlu0 %v1677, 12
        %v1696 = vpop.permute.xlu0 %1695
        %1697 = vrot.lane.b32.xlu0 %v1678, 12
        %v1698 = vpop.permute.xlu0 %1697
        %1699 = vrot.lane.b32.xlu0 %v1679, 12
        %v1700 = vpop.permute.xlu0 %1699
        %1701 = vrot.lane.b32.xlu0 %v1680, 12
        %v1702 = vpop.permute.xlu0 %1701
        %1703 = vrot.lane.b32.xlu0 %v1681, 12
        %v1704 = vpop.permute.xlu0 %1703
        %1705 = vrot.lane.b32.xlu0 %v1682, 12
        %v1706 = vpop.permute.xlu0 %1705
        %1707 = vrot.lane.b32.xlu0 %v1683, 12
        %v1708 = vpop.permute.xlu0 %1707
        %1709 = vrot.lane.b32.xlu0 %v1684, 12
        %v1710 = vpop.permute.xlu0 %1709
        %1711 = vrot.lane.b32.xlu0 %v1685, 12
        %v1712 = vpop.permute.xlu0 %1711
        %1713 = vrot.lane.b32.xlu0 %v1686, 12
        %v1714 = vpop.permute.xlu0 %1713
        %1715 = vrot.lane.b32.xlu0 %v1687, 12
        %v1716 = vpop.permute.xlu0 %1715
        %1717 = vrot.lane.b32.xlu0 %v1688, 12
        %v1718 = vpop.permute.xlu0 %1717
        %1719 = vrot.lane.b32.xlu0 %v1689, 12
        %v1720 = vpop.permute.xlu0 %1719
        %1721 = vrot.lane.b32.xlu0 %v1690, 12
        %v1722 = vpop.permute.xlu0 %1721
        %vm1723 = vcmask 31744
        %v1726 = vsel %vm1723, %v1467, %v1532
        %v1729 = vsel %vm1723, %v1468, %v1534
        %v1732 = vsel %vm1723, %v1469, %v1536
        %v1735 = vsel %vm1723, %v1470, %v1538
        %v1738 = vsel %vm1723, %v1471, %v1540
        %v1741 = vsel %vm1723, %v1472, %v1542
        %v1744 = vsel %vm1723, %v1473, %v1544
        %v1747 = vsel %vm1723, %v1474, %v1546
        %v1750 = vsel %vm1723, %v1475, %v1548
        %v1753 = vsel %vm1723, %v1476, %v1550
        %v1756 = vsel %vm1723, %v1477, %v1552
        %v1759 = vsel %vm1723, %v1478, %v1554
        %v1762 = vsel %vm1723, %v1479, %v1556
        %v1765 = vsel %vm1723, %v1480, %v1558
        %v1768 = vsel %vm1723, %v1481, %v1560
        %v1771 = vsel %vm1723, %v1482, %v1562
        %vm1772 = vcmask 64512
        %v1774 = vsel %vm1772, %v1726, %v1612
        %v1776 = vsel %vm1772, %v1729, %v1614
        %v1778 = vsel %vm1772, %v1732, %v1616
        %v1780 = vsel %vm1772, %v1735, %v1618
        %v1782 = vsel %vm1772, %v1738, %v1620
        %v1784 = vsel %vm1772, %v1741, %v1622
        %v1786 = vsel %vm1772, %v1744, %v1624
        %v1788 = vsel %vm1772, %v1747, %v1626
        %v1790 = vsel %vm1772, %v1750, %v1628
        %v1792 = vsel %vm1772, %v1753, %v1630
        %v1794 = vsel %vm1772, %v1756, %v1632
        %v1796 = vsel %vm1772, %v1759, %v1634
        %v1798 = vsel %vm1772, %v1762, %v1636
        %v1800 = vsel %vm1772, %v1765, %v1638
        %v1802 = vsel %vm1772, %v1768, %v1640
        %v1804 = vsel %vm1772, %v1771, %v1642
        %vm1805 = vcmask 97280
        %v1807 = vsel %vm1805, %v1774, %v1692
        %v1809 = vsel %vm1805, %v1776, %v1694
        %v1811 = vsel %vm1805, %v1778, %v1696
        %v1813 = vsel %vm1805, %v1780, %v1698
        %v1815 = vsel %vm1805, %v1782, %v1700
        %v1817 = vsel %vm1805, %v1784, %v1702
        %v1819 = vsel %vm1805, %v1786, %v1704
        %v1821 = vsel %vm1805, %v1788, %v1706
        %v1823 = vsel %vm1805, %v1790, %v1708
        %v1825 = vsel %vm1805, %v1792, %v1710
        %v1827 = vsel %vm1805, %v1794, %v1712
        %v1829 = vsel %vm1805, %v1796, %v1714
        %v1831 = vsel %vm1805, %v1798, %v1716
        %v1833 = vsel %vm1805, %v1800, %v1718
        %v1835 = vsel %vm1805, %v1802, %v1720
        %v1837 = vsel %vm1805, %v1804, %v1722
        %s1838 = smul.u32 %s29, 4
        %s1839 = smul.addr %s1838, 4
        %s1840 = scalar_lea.vmem %s1, %s1839
        %v1841 = vld [vmem:[%s1840] sm:$0xf]
        %v1842 = vld [vmem:[%s1840 + $0x4] sm:$0xf]
        %v1845 = vunpack.c.l.b16 %v1841
        %v1846 = vunpack.c.l.b16 %v1842
        %v1847 = vpack.c.b16 %v1846, %v1845
        %vm1849 = vcmask 130048
        %v1850 = vsel %vm1849, %v1807, 0
        %v1852 = vsel %vm1849, %v1809, 0
        %v1854 = vsel %vm1849, %v1811, 0
        %v1856 = vsel %vm1849, %v1813, 0
        %v1858 = vsel %vm1849, %v1815, 0
        %v1860 = vsel %vm1849, %v1817, 0
        %v1862 = vsel %vm1849, %v1819, 0
        %v1864 = vsel %vm1849, %v1821, 0
        %v1866 = vsel %vm1849, %v1823, 0
        %v1868 = vsel %vm1849, %v1825, 0
        %v1870 = vsel %vm1849, %v1827, 0
        %v1872 = vsel %vm1849, %v1829, 0
        %v1874 = vsel %vm1849, %v1831, 0
        %v1876 = vsel %vm1849, %v1833, 0
        %v1878 = vsel %vm1849, %v1835, 0
        %v1880 = vsel %vm1849, %v1837, 0
        %1882 = vmatprep.subr.bf16.mxu0 0
        %1883 = vmatpush1.bf16.msra.mxu0 %v1847
        %1884 = vmatprep.subr.bf16.mxu0 0
        %1885 = vmatpush1.bf16.msra.mxu0 0
        %1886 = vmatprep.subr.bf16.mxu0 0
        %1887 = vmatpush1.bf16.msra.mxu0 0
        %1888 = vmatprep.subr.bf16.mxu0 0
        %1889 = vmatpush1.bf16.msra.mxu0 0
        %1890 = vmatprep.subr.bf16.mxu0 0
        %1891 = vmatpush1.bf16.msra.mxu0 0
        %1892 = vmatprep.subr.bf16.mxu0 0
        %1893 = vmatpush1.bf16.msra.mxu0 0
        %1894 = vmatprep.subr.bf16.mxu0 0
        %1895 = vmatpush1.bf16.msra.mxu0 0
        %1896 = vmatprep.subr.bf16.mxu0 0
        %1897 = vmatpush1.bf16.msra.mxu0 0
        %1898 = vmatprep.subr.bf16.mxu0 0
        %1899 = vmatpush1.bf16.msra.mxu0 0
        %1900 = vmatprep.subr.bf16.mxu0 0
        %1901 = vmatpush1.bf16.msra.mxu0 0
        %1902 = vmatprep.subr.bf16.mxu0 0
        %1903 = vmatpush1.bf16.msra.mxu0 0
        %1904 = vmatprep.subr.bf16.mxu0 0
        %1905 = vmatpush1.bf16.msra.mxu0 0
        %1906 = vmatprep.subr.bf16.mxu0 0
        %1907 = vmatpush1.bf16.msra.mxu0 0
        %1908 = vmatprep.subr.bf16.mxu0 0
        %1909 = vmatpush1.bf16.msra.mxu0 0
        %1910 = vmatprep.subr.bf16.mxu0 0
        %1911 = vmatpush1.bf16.msra.mxu0 0
        %1912 = vmatprep.subr.bf16.mxu0 0
        %1913 = vmatpush1.bf16.msra.mxu0 0
        %1914 = vmatprep.mubr.bf16.mxu0 0
        %1915 = vmatmul.mubr.bf16.gmra.mrb[0].mxu0 %v1850
        %v1916 = vpop.f32.mrb[0].mxu0
        %v1917 = vadd.f32 0.0, %v1916
        %v1918 = vpop.f32.mrb[0].mxu0
        %v1919 = vpop.f32.mrb[0].mxu0
        %v1920 = vadd.f32 0.0, %v1919
        %v1921 = vpop.f32.mrb[0].mxu0
        %1922 = vmatprep.mubr.bf16.mxu0 0
        %1923 = vmatmul.mubr.bf16.gmra.mrb[0].mxu0 %v1852
        %v1924 = vpop.f32.mrb[0].mxu0
        %v1925 = vadd.f32 0.0, %v1924
        %v1926 = vpop.f32.mrb[0].mxu0
        %v1927 = vpop.f32.mrb[0].mxu0
        %v1928 = vadd.f32 0.0, %v1927
        %v1929 = vpop.f32.mrb[0].mxu0
        %1930 = vmatprep.mubr.bf16.mxu0 0
        %1931 = vmatmul.mubr.bf16.gmra.mrb[0].mxu0 %v1854
        %v1932 = vpop.f32.mrb[0].mxu0
        %v1933 = vadd.f32 0.0, %v1932
        %v1934 = vpop.f32.mrb[0].mxu0
        %v1935 = vpop.f32.mrb[0].mxu0
        %v1936 = vadd.f32 0.0, %v1935
        %v1937 = vpop.f32.mrb[0].mxu0
        %1938 = vmatprep.mubr.bf16.mxu0 0
        %1939 = vmatmul.mubr.bf16.gmra.mrb[0].mxu0 %v1856
        %v1940 = vpop.f32.mrb[0].mxu0
        %v1941 = vadd.f32 0.0, %v1940
        %v1942 = vpop.f32.mrb[0].mxu0
        %v1943 = vpop.f32.mrb[0].mxu0
        %v1944 = vadd.f32 0.0, %v1943
        %v1945 = vpop.f32.mrb[0].mxu0
        %1946 = vmatprep.mubr.bf16.mxu0 0
        %1947 = vmatmul.mubr.bf16.gmra.mrb[0].mxu0 %v1858
        %v1948 = vpop.f32.mrb[0].mxu0
        %v1949 = vadd.f32 0.0, %v1948
        %v1950 = vpop.f32.mrb[0].mxu0
        %v1951 = vpop.f32.mrb[0].mxu0
        %v1952 = vadd.f32 0.0, %v1951
        %v1953 = vpop.f32.mrb[0].mxu0
        %1954 = vmatprep.mubr.bf16.mxu0 0
        %1955 = vmatmul.mubr.bf16.gmra.mrb[0].mxu0 %v1860
        %v1956 = vpop.f32.mrb[0].mxu0
        %v1957 = vadd.f32 0.0, %v1956
        %v1958 = vpop.f32.mrb[0].mxu0
        %v1959 = vpop.f32.mrb[0].mxu0
        %v1960 = vadd.f32 0.0, %v1959
        %v1961 = vpop.f32.mrb[0].mxu0
        %1962 = vmatprep.mubr.bf16.mxu0 0
        %1963 = vmatmul.mubr.bf16.gmra.mrb[0].mxu0 %v1862
        %v1964 = vpop.f32.mrb[0].mxu0
        %v1965 = vadd.f32 0.0, %v1964
        %v1966 = vpop.f32.mrb[0].mxu0
        %v1967 = vpop.f32.mrb[0].mxu0
        %v1968 = vadd.f32 0.0, %v1967
        %v1969 = vpop.f32.mrb[0].mxu0
        %1970 = vmatprep.mubr.bf16.mxu0 0
        %1971 = vmatmul.mubr.bf16.gmra.mrb[0].mxu0 %v1864
        %v1972 = vpop.f32.mrb[0].mxu0
        %v1973 = vadd.f32 0.0, %v1972
        %v1974 = vpop.f32.mrb[0].mxu0
        %v1975 = vpop.f32.mrb[0].mxu0
        %v1976 = vadd.f32 0.0, %v1975
        %v1977 = vpop.f32.mrb[0].mxu0
        %1978 = vmatprep.mubr.bf16.mxu0 0
        %1979 = vmatmul.mubr.bf16.gmra.mrb[0].mxu0 %v1866
        %v1980 = vpop.f32.mrb[0].mxu0
        %v1981 = vadd.f32 0.0, %v1980
        %v1982 = vpop.f32.mrb[0].mxu0
        %v1983 = vpop.f32.mrb[0].mxu0
        %v1984 = vadd.f32 0.0, %v1983
        %v1985 = vpop.f32.mrb[0].mxu0
        %1986 = vmatprep.mubr.bf16.mxu0 0
        %1987 = vmatmul.mubr.bf16.gmra.mrb[0].mxu0 %v1868
        %v1988 = vpop.f32.mrb[0].mxu0
        %v1989 = vadd.f32 0.0, %v1988
        %v1990 = vpop.f32.mrb[0].mxu0
        %v1991 = vpop.f32.mrb[0].mxu0
        %v1992 = vadd.f32 0.0, %v1991
        %v1993 = vpop.f32.mrb[0].mxu0
        %1994 = vmatprep.mubr.bf16.mxu0 0
        %1995 = vmatmul.mubr.bf16.gmra.mrb[0].mxu0 %v1870
        %v1996 = vpop.f32.mrb[0].mxu0
        %v1997 = vadd.f32 0.0, %v1996
        %v1998 = vpop.f32.mrb[0].mxu0
        %v1999 = vpop.f32.mrb[0].mxu0
        %v2000 = vadd.f32 0.0, %v1999
        %v2001 = vpop.f32.mrb[0].mxu0
        %2002 = vmatprep.mubr.bf16.mxu0 0
        %2003 = vmatmul.mubr.bf16.gmra.mrb[0].mxu0 %v1872
        %v2004 = vpop.f32.mrb[0].mxu0
        %v2005 = vadd.f32 0.0, %v2004
        %v2006 = vpop.f32.mrb[0].mxu0
        %v2007 = vpop.f32.mrb[0].mxu0
        %v2008 = vadd.f32 0.0, %v2007
        %v2009 = vpop.f32.mrb[0].mxu0
        %2010 = vmatprep.mubr.bf16.mxu0 0
        %2011 = vmatmul.mubr.bf16.gmra.mrb[0].mxu0 %v1874
        %v2012 = vpop.f32.mrb[0].mxu0
        %v2013 = vadd.f32 0.0, %v2012
        %v2014 = vpop.f32.mrb[0].mxu0
        %v2015 = vpop.f32.mrb[0].mxu0
        %v2016 = vadd.f32 0.0, %v2015
        %v2017 = vpop.f32.mrb[0].mxu0
        %2018 = vmatprep.mubr.bf16.mxu0 0
        %2019 = vmatmul.mubr.bf16.gmra.mrb[0].mxu0 %v1876
        %v2020 = vpop.f32.mrb[0].mxu0
        %v2021 = vadd.f32 0.0, %v2020
        %v2022 = vpop.f32.mrb[0].mxu0
        %v2023 = vpop.f32.mrb[0].mxu0
        %v2024 = vadd.f32 0.0, %v2023
        %v2025 = vpop.f32.mrb[0].mxu0
        %2026 = vmatprep.mubr.bf16.mxu0 0
        %2027 = vmatmul.mubr.bf16.gmra.mrb[0].mxu0 %v1878
        %v2028 = vpop.f32.mrb[0].mxu0
        %v2029 = vadd.f32 0.0, %v2028
        %v2030 = vpop.f32.mrb[0].mxu0
        %v2031 = vpop.f32.mrb[0].mxu0
        %v2032 = vadd.f32 0.0, %v2031
        %v2033 = vpop.f32.mrb[0].mxu0
        %2034 = vmatprep.mubr.bf16.mxu0 0
        %2035 = vmatmul.mubr.bf16.gmra.mrb[0].mxu0 %v1880
        %v2036 = vpop.f32.mrb[0].mxu0
        %v2037 = vadd.f32 0.0, %v2036
        %v2038 = vpop.f32.mrb[0].mxu0
        %v2039 = vpop.f32.mrb[0].mxu0
        %v2040 = vadd.f32 0.0, %v2039
        %v2041 = vpop.f32.mrb[0].mxu0
        %2042 = vdwg.mxu0
        %v2043 = vunpack.c.l.b16 %v730
        %v2044 = vunpack.c.l.b16 %v733
        %v2045 = vunpack.c.l.b16 %v737
        %v2046 = vunpack.c.l.b16 %v740
        %v2047 = vunpack.c.l.b16 %v744
        %v2048 = vunpack.c.l.b16 %v747
        %v2049 = vunpack.c.l.b16 %v751
        %v2050 = vunpack.c.l.b16 %v754
        %v2051 = vunpack.c.l.b16 %v758
        %v2052 = vunpack.c.l.b16 %v761
        %v2053 = vunpack.c.l.b16 %v765
        %v2054 = vunpack.c.l.b16 %v768
        %v2055 = vunpack.c.l.b16 %v772
        %v2056 = vunpack.c.l.b16 %v775
        %v2057 = vunpack.c.l.b16 %v779
        %v2058 = vunpack.c.l.b16 %v782
        %v2059 = vunpack.c.l.b16 %v786
        %v2060 = vunpack.c.l.b16 %v789
        %v2061 = vunpack.c.l.b16 %v793
        %v2062 = vunpack.c.l.b16 %v796
        %v2063 = vunpack.c.l.b16 %v800
        %v2064 = vunpack.c.l.b16 %v803
        %v2065 = vunpack.c.l.b16 %v807
        %v2066 = vunpack.c.l.b16 %v810
        %v2067 = vunpack.c.l.b16 %v814
        %v2068 = vunpack.c.l.b16 %v817
        %v2069 = vunpack.c.l.b16 %v821
        %v2070 = vunpack.c.l.b16 %v824
        %v2071 = vunpack.c.l.b16 %v828
        %v2072 = vunpack.c.l.b16 %v831
        %v2073 = vunpack.c.l.b16 %v835
        %v2074 = vunpack.c.l.b16 %v838
        %v2075 = vpack.c.b16 %v2044, %v2043
        %v2076 = vpack.c.b16 %v2046, %v2045
        %v2077 = vpack.c.b16 %v2048, %v2047
        %v2078 = vpack.c.b16 %v2050, %v2049
        %v2079 = vpack.c.b16 %v2052, %v2051
        %v2080 = vpack.c.b16 %v2054, %v2053
        %v2081 = vpack.c.b16 %v2056, %v2055
        %v2082 = vpack.c.b16 %v2058, %v2057
        %v2083 = vpack.c.b16 %v2060, %v2059
        %v2084 = vpack.c.b16 %v2062, %v2061
        %v2085 = vpack.c.b16 %v2064, %v2063
        %v2086 = vpack.c.b16 %v2066, %v2065
        %v2087 = vpack.c.b16 %v2068, %v2067
        %v2088 = vpack.c.b16 %v2070, %v2069
        %v2089 = vpack.c.b16 %v2072, %v2071
        %v2090 = vpack.c.b16 %v2074, %v2073
        %2091 = vrot.lane.b32.xlu0 %v2075, 4
        %v2092 = vpop.permute.xlu0 %2091
        %2093 = vrot.lane.b32.xlu0 %v2076, 4
        %v2094 = vpop.permute.xlu0 %2093
        %2095 = vrot.lane.b32.xlu0 %v2077, 4
        %v2096 = vpop.permute.xlu0 %2095
        %2097 = vrot.lane.b32.xlu0 %v2078, 4
        %v2098 = vpop.permute.xlu0 %2097
        %2099 = vrot.lane.b32.xlu0 %v2079, 4
        %v2100 = vpop.permute.xlu0 %2099
        %2101 = vrot.lane.b32.xlu0 %v2080, 4
        %v2102 = vpop.permute.xlu0 %2101
        %2103 = vrot.lane.b32.xlu0 %v2081, 4
        %v2104 = vpop.permute.xlu0 %2103
        %2105 = vrot.lane.b32.xlu0 %v2082, 4
        %v2106 = vpop.permute.xlu0 %2105
        %2107 = vrot.lane.b32.xlu0 %v2083, 4
        %v2108 = vpop.permute.xlu0 %2107
        %2109 = vrot.lane.b32.xlu0 %v2084, 4
        %v2110 = vpop.permute.xlu0 %2109
        %2111 = vrot.lane.b32.xlu0 %v2085, 4
        %v2112 = vpop.permute.xlu0 %2111
        %2113 = vrot.lane.b32.xlu0 %v2086, 4
        %v2114 = vpop.permute.xlu0 %2113
        %2115 = vrot.lane.b32.xlu0 %v2087, 4
        %v2116 = vpop.permute.xlu0 %2115
        %2117 = vrot.lane.b32.xlu0 %v2088, 4
        %v2118 = vpop.permute.xlu0 %2117
        %2119 = vrot.lane.b32.xlu0 %v2089, 4
        %v2120 = vpop.permute.xlu0 %2119
        %2121 = vrot.lane.b32.xlu0 %v2090, 4
        %v2122 = vpop.permute.xlu0 %2121
        %2123 = vrot.lane.b32.xlu0 %v1675, 8
        %v2124 = vpop.permute.xlu0 %2123
        %2125 = vrot.lane.b32.xlu0 %v1676, 8
        %v2126 = vpop.permute.xlu0 %2125
        %2127 = vrot.lane.b32.xlu0 %v1677, 8
        %v2128 = vpop.permute.xlu0 %2127
        %2129 = vrot.lane.b32.xlu0 %v1678, 8
        %v2130 = vpop.permute.xlu0 %2129
        %2131 = vrot.lane.b32.xlu0 %v1679, 8
        %v2132 = vpop.permute.xlu0 %2131
        %2133 = vrot.lane.b32.xlu0 %v1680, 8
        %v2134 = vpop.permute.xlu0 %2133
        %2135 = vrot.lane.b32.xlu0 %v1681, 8
        %v2136 = vpop.permute.xlu0 %2135
        %2137 = vrot.lane.b32.xlu0 %v1682, 8
        %v2138 = vpop.permute.xlu0 %2137
        %2139 = vrot.lane.b32.xlu0 %v1683, 8
        %v2140 = vpop.permute.xlu0 %2139
        %2141 = vrot.lane.b32.xlu0 %v1684, 8
        %v2142 = vpop.permute.xlu0 %2141
        %2143 = vrot.lane.b32.xlu0 %v1685, 8
        %v2144 = vpop.permute.xlu0 %2143
        %2145 = vrot.lane.b32.xlu0 %v1686, 8
        %v2146 = vpop.permute.xlu0 %2145
        %2147 = vrot.lane.b32.xlu0 %v1687, 8
        %v2148 = vpop.permute.xlu0 %2147
        %2149 = vrot.lane.b32.xlu0 %v1688, 8
        %v2150 = vpop.permute.xlu0 %2149
        %2151 = vrot.lane.b32.xlu0 %v1689, 8
        %v2152 = vpop.permute.xlu0 %2151
        %2153 = vrot.lane.b32.xlu0 %v1690, 8
        %v2154 = vpop.permute.xlu0 %2153
        %v2155 = vunpack.c.l.b16 %v1326
        %v2156 = vunpack.c.l.b16 %v1329
        %v2157 = vunpack.c.l.b16 %v1333
        %v2158 = vunpack.c.l.b16 %v1336
        %v2159 = vunpack.c.l.b16 %v1340
        %v2160 = vunpack.c.l.b16 %v1343
        %v2161 = vunpack.c.l.b16 %v1347
        %v2162 = vunpack.c.l.b16 %v1350
        %v2163 = vunpack.c.l.b16 %v1354
        %v2164 = vunpack.c.l.b16 %v1357
        %v2165 = vunpack.c.l.b16 %v1361
        %v2166 = vunpack.c.l.b16 %v1364
        %v2167 = vunpack.c.l.b16 %v1368
        %v2168 = vunpack.c.l.b16 %v1371
        %v2169 = vunpack.c.l.b16 %v1375
        %v2170 = vunpack.c.l.b16 %v1378
        %v2171 = vunpack.c.l.b16 %v1382
        %v2172 = vunpack.c.l.b16 %v1385
        %v2173 = vunpack.c.l.b16 %v1389
        %v2174 = vunpack.c.l.b16 %v1392
        %v2175 = vunpack.c.l.b16 %v1396
        %v2176 = vunpack.c.l.b16 %v1399
        %v2177 = vunpack.c.l.b16 %v1403
        %v2178 = vunpack.c.l.b16 %v1406
        %v2179 = vunpack.c.l.b16 %v1410
        %v2180 = vunpack.c.l.b16 %v1413
        %v2181 = vunpack.c.l.b16 %v1417
        %v2182 = vunpack.c.l.b16 %v1420
        %v2183 = vunpack.c.l.b16 %v1424
        %v2184 = vunpack.c.l.b16 %v1427
        %v2185 = vunpack.c.l.b16 %v1431
        %v2186 = vunpack.c.l.b16 %v1434
        %v2187 = vpack.c.b16 %v2156, %v2155
        %v2188 = vpack.c.b16 %v2158, %v2157
        %v2189 = vpack.c.b16 %v2160, %v2159
        %v2190 = vpack.c.b16 %v2162, %v2161
        %v2191 = vpack.c.b16 %v2164, %v2163
        %v2192 = vpack.c.b16 %v2166, %v2165
        %v2193 = vpack.c.b16 %v2168, %v2167
        %v2194 = vpack.c.b16 %v2170, %v2169
        %v2195 = vpack.c.b16 %v2172, %v2171
        %v2196 = vpack.c.b16 %v2174, %v2173
        %v2197 = vpack.c.b16 %v2176, %v2175
        %v2198 = vpack.c.b16 %v2178, %v2177
        %v2199 = vpack.c.b16 %v2180, %v2179
        %v2200 = vpack.c.b16 %v2182, %v2181
        %v2201 = vpack.c.b16 %v2184, %v2183
        %v2202 = vpack.c.b16 %v2186, %v2185
        %2203 = vrot.lane.b32.xlu0 %v2187, 12
        %v2204 = vpop.permute.xlu0 %2203
        %2205 = vrot.lane.b32.xlu0 %v2188, 12
        %v2206 = vpop.permute.xlu0 %2205
        %2207 = vrot.lane.b32.xlu0 %v2189, 12
        %v2208 = vpop.permute.xlu0 %2207
        %2209 = vrot.lane.b32.xlu0 %v2190, 12
        %v2210 = vpop.permute.xlu0 %2209
        %2211 = vrot.lane.b32.xlu0 %v2191, 12
        %v2212 = vpop.permute.xlu0 %2211
        %2213 = vrot.lane.b32.xlu0 %v2192, 12
        %v2214 = vpop.permute.xlu0 %2213
        %2215 = vrot.lane.b32.xlu0 %v2193, 12
        %v2216 = vpop.permute.xlu0 %2215
        %2217 = vrot.lane.b32.xlu0 %v2194, 12
        %v2218 = vpop.permute.xlu0 %2217
        %2219 = vrot.lane.b32.xlu0 %v2195, 12
        %v2220 = vpop.permute.xlu0 %2219
        %2221 = vrot.lane.b32.xlu0 %v2196, 12
        %v2222 = vpop.permute.xlu0 %2221
        %2223 = vrot.lane.b32.xlu0 %v2197, 12
        %v2224 = vpop.permute.xlu0 %2223
        %2225 = vrot.lane.b32.xlu0 %v2198, 12
        %v2226 = vpop.permute.xlu0 %2225
        %2227 = vrot.lane.b32.xlu0 %v2199, 12
        %v2228 = vpop.permute.xlu0 %2227
        %2229 = vrot.lane.b32.xlu0 %v2200, 12
        %v2230 = vpop.permute.xlu0 %2229
        %2231 = vrot.lane.b32.xlu0 %v2201, 12
        %v2232 = vpop.permute.xlu0 %2231
        %2233 = vrot.lane.b32.xlu0 %v2202, 12
        %v2234 = vpop.permute.xlu0 %2233
        %v2237 = vsel %vm1723, %v1515, %v2092
        %v2240 = vsel %vm1723, %v1516, %v2094
        %v2243 = vsel %vm1723, %v1517, %v2096
        %v2246 = vsel %vm1723, %v1518, %v2098
        %v2249 = vsel %vm1723, %v1519, %v2100
        %v2252 = vsel %vm1723, %v1520, %v2102
        %v2255 = vsel %vm1723, %v1521, %v2104
        %v2258 = vsel %vm1723, %v1522, %v2106
        %v2261 = vsel %vm1723, %v1523, %v2108
        %v2264 = vsel %vm1723, %v1524, %v2110
        %v2267 = vsel %vm1723, %v1525, %v2112
        %v2270 = vsel %vm1723, %v1526, %v2114
        %v2273 = vsel %vm1723, %v1527, %v2116
        %v2276 = vsel %vm1723, %v1528, %v2118
        %v2279 = vsel %vm1723, %v1529, %v2120
        %v2282 = vsel %vm1723, %v1530, %v2122
        %v2284 = vsel %vm1772, %v2237, %v2124
        %v2286 = vsel %vm1772, %v2240, %v2126
        %v2288 = vsel %vm1772, %v2243, %v2128
        %v2290 = vsel %vm1772, %v2246, %v2130
        %v2292 = vsel %vm1772, %v2249, %v2132
        %v2294 = vsel %vm1772, %v2252, %v2134
        %v2296 = vsel %vm1772, %v2255, %v2136
        %v2298 = vsel %vm1772, %v2258, %v2138
        %v2300 = vsel %vm1772, %v2261, %v2140
        %v2302 = vsel %vm1772, %v2264, %v2142
        %v2304 = vsel %vm1772, %v2267, %v2144
        %v2306 = vsel %vm1772, %v2270, %v2146
        %v2308 = vsel %vm1772, %v2273, %v2148
        %v2310 = vsel %vm1772, %v2276, %v2150
        %v2312 = vsel %vm1772, %v2279, %v2152
        %v2314 = vsel %vm1772, %v2282, %v2154
        %v2316 = vsel %vm1805, %v2284, %v2204
        %v2318 = vsel %vm1805, %v2286, %v2206
        %v2320 = vsel %vm1805, %v2288, %v2208
        %v2322 = vsel %vm1805, %v2290, %v2210
        %v2324 = vsel %vm1805, %v2292, %v2212
        %v2326 = vsel %vm1805, %v2294, %v2214
        %v2328 = vsel %vm1805, %v2296, %v2216
        %v2330 = vsel %vm1805, %v2298, %v2218
        %v2332 = vsel %vm1805, %v2300, %v2220
        %v2334 = vsel %vm1805, %v2302, %v2222
        %v2336 = vsel %vm1805, %v2304, %v2224
        %v2338 = vsel %vm1805, %v2306, %v2226
        %v2340 = vsel %vm1805, %v2308, %v2228
        %v2342 = vsel %vm1805, %v2310, %v2230
        %v2344 = vsel %vm1805, %v2312, %v2232
        %v2346 = vsel %vm1805, %v2314, %v2234
        %s2347 = sadd.s32 2, %s1838
        %s2348 = smul.addr %s2347, 4
        %s2349 = scalar_lea.vmem %s1, %s2348
        %v2350 = vld [vmem:[%s2349] sm:$0xf]
        %v2351 = vld [vmem:[%s2349 + $0x4] sm:$0xf]
        %v2354 = vunpack.c.l.b16 %v2350
        %v2355 = vunpack.c.l.b16 %v2351
        %v2356 = vpack.c.b16 %v2355, %v2354
        %v2358 = vsel %vm1849, %v2316, 0
        %v2360 = vsel %vm1849, %v2318, 0
        %v2362 = vsel %vm1849, %v2320, 0
        %v2364 = vsel %vm1849, %v2322, 0
        %v2366 = vsel %vm1849, %v2324, 0
        %v2368 = vsel %vm1849, %v2326, 0
        %v2370 = vsel %vm1849, %v2328, 0
        %v2372 = vsel %vm1849, %v2330, 0
        %v2374 = vsel %vm1849, %v2332, 0
        %v2376 = vsel %vm1849, %v2334, 0
        %v2378 = vsel %vm1849, %v2336, 0
        %v2380 = vsel %vm1849, %v2338, 0
        %v2382 = vsel %vm1849, %v2340, 0
        %v2384 = vsel %vm1849, %v2342, 0
        %v2386 = vsel %vm1849, %v2344, 0
        %v2388 = vsel %vm1849, %v2346, 0
        %2390 = vmatprep.subr.bf16.mxu0 0
        %2391 = vmatpush1.bf16.msra.mxu0 %v2356
        %2392 = vmatprep.subr.bf16.mxu0 0
        %2393 = vmatpush1.bf16.msra.mxu0 0
        %2394 = vmatprep.subr.bf16.mxu0 0
        %2395 = vmatpush1.bf16.msra.mxu0 0
        %2396 = vmatprep.subr.bf16.mxu0 0
        %2397 = vmatpush1.bf16.msra.mxu0 0
        %2398 = vmatprep.subr.bf16.mxu0 0
        %2399 = vmatpush1.bf16.msra.mxu0 0
        %2400 = vmatprep.subr.bf16.mxu0 0
        %2401 = vmatpush1.bf16.msra.mxu0 0
        %2402 = vmatprep.subr.bf16.mxu0 0
        %2403 = vmatpush1.bf16.msra.mxu0 0
        %2404 = vmatprep.subr.bf16.mxu0 0
        %2405 = vmatpush1.bf16.msra.mxu0 0
        %2406 = vmatprep.subr.bf16.mxu0 0
        %2407 = vmatpush1.bf16.msra.mxu0 0
        %2408 = vmatprep.subr.bf16.mxu0 0
        %2409 = vmatpush1.bf16.msra.mxu0 0
        %2410 = vmatprep.subr.bf16.mxu0 0
        %2411 = vmatpush1.bf16.msra.mxu0 0
        %2412 = vmatprep.subr.bf16.mxu0 0
        %2413 = vmatpush1.bf16.msra.mxu0 0
        %2414 = vmatprep.subr.bf16.mxu0 0
        %2415 = vmatpush1.bf16.msra.mxu0 0
        %2416 = vmatprep.subr.bf16.mxu0 0
        %2417 = vmatpush1.bf16.msra.mxu0 0
        %2418 = vmatprep.subr.bf16.mxu0 0
        %2419 = vmatpush1.bf16.msra.mxu0 0
        %2420 = vmatprep.subr.bf16.mxu0 0
        %2421 = vmatpush1.bf16.msra.mxu0 0
        %2422 = vmatprep.mubr.bf16.mxu0 0
        %2423 = vmatmul.mubr.bf16.gmra.mrb[0].mxu0 %v2358
        %v2424 = vpop.f32.mrb[0].mxu0
        %v2425 = vadd.f32 0.0, %v2424
        %v2426 = vpop.f32.mrb[0].mxu0
        %v2427 = vpop.f32.mrb[0].mxu0
        %v2428 = vadd.f32 0.0, %v2427
        %v2429 = vpop.f32.mrb[0].mxu0
        %2430 = vmatprep.mubr.bf16.mxu0 0
        %2431 = vmatmul.mubr.bf16.gmra.mrb[0].mxu0 %v2360
        %v2432 = vpop.f32.mrb[0].mxu0
        %v2433 = vadd.f32 0.0, %v2432
        %v2434 = vpop.f32.mrb[0].mxu0
        %v2435 = vpop.f32.mrb[0].mxu0
        %v2436 = vadd.f32 0.0, %v2435
        %v2437 = vpop.f32.mrb[0].mxu0
        %2438 = vmatprep.mubr.bf16.mxu0 0
        %2439 = vmatmul.mubr.bf16.gmra.mrb[0].mxu0 %v2362
        %v2440 = vpop.f32.mrb[0].mxu0
        %v2441 = vadd.f32 0.0, %v2440
        %v2442 = vpop.f32.mrb[0].mxu0
        %v2443 = vpop.f32.mrb[0].mxu0
        %v2444 = vadd.f32 0.0, %v2443
        %v2445 = vpop.f32.mrb[0].mxu0
        %2446 = vmatprep.mubr.bf16.mxu0 0
        %2447 = vmatmul.mubr.bf16.gmra.mrb[0].mxu0 %v2364
        %v2448 = vpop.f32.mrb[0].mxu0
        %v2449 = vadd.f32 0.0, %v2448
        %v2450 = vpop.f32.mrb[0].mxu0
        %v2451 = vpop.f32.mrb[0].mxu0
        %v2452 = vadd.f32 0.0, %v2451
        %v2453 = vpop.f32.mrb[0].mxu0
        %2454 = vmatprep.mubr.bf16.mxu0 0
        %2455 = vmatmul.mubr.bf16.gmra.mrb[0].mxu0 %v2366
        %v2456 = vpop.f32.mrb[0].mxu0
        %v2457 = vadd.f32 0.0, %v2456
        %v2458 = vpop.f32.mrb[0].mxu0
        %v2459 = vpop.f32.mrb[0].mxu0
        %v2460 = vadd.f32 0.0, %v2459
        %v2461 = vpop.f32.mrb[0].mxu0
        %2462 = vmatprep.mubr.bf16.mxu0 0
        %2463 = vmatmul.mubr.bf16.gmra.mrb[0].mxu0 %v2368
        %v2464 = vpop.f32.mrb[0].mxu0
        %v2465 = vadd.f32 0.0, %v2464
        %v2466 = vpop.f32.mrb[0].mxu0
        %v2467 = vpop.f32.mrb[0].mxu0
        %v2468 = vadd.f32 0.0, %v2467
        %v2469 = vpop.f32.mrb[0].mxu0
        %2470 = vmatprep.mubr.bf16.mxu0 0
        %2471 = vmatmul.mubr.bf16.gmra.mrb[0].mxu0 %v2370
        %v2472 = vpop.f32.mrb[0].mxu0
        %v2473 = vadd.f32 0.0, %v2472
        %v2474 = vpop.f32.mrb[0].mxu0
        %v2475 = vpop.f32.mrb[0].mxu0
        %v2476 = vadd.f32 0.0, %v2475
        %v2477 = vpop.f32.mrb[0].mxu0
        %2478 = vmatprep.mubr.bf16.mxu0 0
        %2479 = vmatmul.mubr.bf16.gmra.mrb[0].mxu0 %v2372
        %v2480 = vpop.f32.mrb[0].mxu0
        %v2481 = vadd.f32 0.0, %v2480
        %v2482 = vpop.f32.mrb[0].mxu0
        %v2483 = vpop.f32.mrb[0].mxu0
        %v2484 = vadd.f32 0.0, %v2483
        %v2485 = vpop.f32.mrb[0].mxu0
        %2486 = vmatprep.mubr.bf16.mxu0 0
        %2487 = vmatmul.mubr.bf16.gmra.mrb[0].mxu0 %v2374
        %v2488 = vpop.f32.mrb[0].mxu0
        %v2489 = vadd.f32 0.0, %v2488
        %v2490 = vpop.f32.mrb[0].mxu0
        %v2491 = vpop.f32.mrb[0].mxu0
        %v2492 = vadd.f32 0.0, %v2491
        %v2493 = vpop.f32.mrb[0].mxu0
        %2494 = vmatprep.mubr.bf16.mxu0 0
        %2495 = vmatmul.mubr.bf16.gmra.mrb[0].mxu0 %v2376
        %v2496 = vpop.f32.mrb[0].mxu0
        %v2497 = vadd.f32 0.0, %v2496
        %v2498 = vpop.f32.mrb[0].mxu0
        %v2499 = vpop.f32.mrb[0].mxu0
        %v2500 = vadd.f32 0.0, %v2499
        %v2501 = vpop.f32.mrb[0].mxu0
        %2502 = vmatprep.mubr.bf16.mxu0 0
        %2503 = vmatmul.mubr.bf16.gmra.mrb[0].mxu0 %v2378
        %v2504 = vpop.f32.mrb[0].mxu0
        %v2505 = vadd.f32 0.0, %v2504
        %v2506 = vpop.f32.mrb[0].mxu0
        %v2507 = vpop.f32.mrb[0].mxu0
        %v2508 = vadd.f32 0.0, %v2507
        %v2509 = vpop.f32.mrb[0].mxu0
        %2510 = vmatprep.mubr.bf16.mxu0 0
        %2511 = vmatmul.mubr.bf16.gmra.mrb[0].mxu0 %v2380
        %v2512 = vpop.f32.mrb[0].mxu0
        %v2513 = vadd.f32 0.0, %v2512
        %v2514 = vpop.f32.mrb[0].mxu0
        %v2515 = vpop.f32.mrb[0].mxu0
        %v2516 = vadd.f32 0.0, %v2515
        %v2517 = vpop.f32.mrb[0].mxu0
        %2518 = vmatprep.mubr.bf16.mxu0 0
        %2519 = vmatmul.mubr.bf16.gmra.mrb[0].mxu0 %v2382
        %v2520 = vpop.f32.mrb[0].mxu0
        %v2521 = vadd.f32 0.0, %v2520
        %v2522 = vpop.f32.mrb[0].mxu0
        %v2523 = vpop.f32.mrb[0].mxu0
        %v2524 = vadd.f32 0.0, %v2523
        %v2525 = vpop.f32.mrb[0].mxu0
        %2526 = vmatprep.mubr.bf16.mxu0 0
        %2527 = vmatmul.mubr.bf16.gmra.mrb[0].mxu0 %v2384
        %v2528 = vpop.f32.mrb[0].mxu0
        %v2529 = vadd.f32 0.0, %v2528
        %v2530 = vpop.f32.mrb[0].mxu0
        %v2531 = vpop.f32.mrb[0].mxu0
        %v2532 = vadd.f32 0.0, %v2531
        %v2533 = vpop.f32.mrb[0].mxu0
        %2534 = vmatprep.mubr.bf16.mxu0 0
        %2535 = vmatmul.mubr.bf16.gmra.mrb[0].mxu0 %v2386
        %v2536 = vpop.f32.mrb[0].mxu0
        %v2537 = vadd.f32 0.0, %v2536
        %v2538 = vpop.f32.mrb[0].mxu0
        %v2539 = vpop.f32.mrb[0].mxu0
        %v2540 = vadd.f32 0.0, %v2539
        %v2541 = vpop.f32.mrb[0].mxu0
        %2542 = vmatprep.mubr.bf16.mxu0 0
        %2543 = vmatmul.mubr.bf16.gmra.mrb[0].mxu0 %v2388
        %v2544 = vpop.f32.mrb[0].mxu0
        %v2545 = vadd.f32 0.0, %v2544
        %v2546 = vpop.f32.mrb[0].mxu0
        %v2547 = vpop.f32.mrb[0].mxu0
        %v2548 = vadd.f32 0.0, %v2547
        %v2549 = vpop.f32.mrb[0].mxu0
        %2550 = vdwg.mxu0
        %2583 = vrot.lane.b32.xlu0 %v2425, 8
        %v2584 = vpop.permute.xlu0 %2583
        %2585 = vrot.lane.b32.xlu0 %v2428, 8
        %v2586 = vpop.permute.xlu0 %2585
        %2587 = vrot.lane.b32.xlu0 %v2433, 8
        %v2588 = vpop.permute.xlu0 %2587
        %2589 = vrot.lane.b32.xlu0 %v2436, 8
        %v2590 = vpop.permute.xlu0 %2589
        %2591 = vrot.lane.b32.xlu0 %v2441, 8
        %v2592 = vpop.permute.xlu0 %2591
        %2593 = vrot.lane.b32.xlu0 %v2444, 8
        %v2594 = vpop.permute.xlu0 %2593
        %2595 = vrot.lane.b32.xlu0 %v2449, 8
        %v2596 = vpop.permute.xlu0 %2595
        %2597 = vrot.lane.b32.xlu0 %v2452, 8
        %v2598 = vpop.permute.xlu0 %2597
        %2599 = vrot.lane.b32.xlu0 %v2457, 8
        %v2600 = vpop.permute.xlu0 %2599
        %2601 = vrot.lane.b32.xlu0 %v2460, 8
        %v2602 = vpop.permute.xlu0 %2601
        %2603 = vrot.lane.b32.xlu0 %v2465, 8
        %v2604 = vpop.permute.xlu0 %2603
        %2605 = vrot.lane.b32.xlu0 %v2468, 8
        %v2606 = vpop.permute.xlu0 %2605
        %2607 = vrot.lane.b32.xlu0 %v2473, 8
        %v2608 = vpop.permute.xlu0 %2607
        %2609 = vrot.lane.b32.xlu0 %v2476, 8
        %v2610 = vpop.permute.xlu0 %2609
        %2611 = vrot.lane.b32.xlu0 %v2481, 8
        %v2612 = vpop.permute.xlu0 %2611
        %2613 = vrot.lane.b32.xlu0 %v2484, 8
        %v2614 = vpop.permute.xlu0 %2613
        %2615 = vrot.lane.b32.xlu0 %v2489, 8
        %v2616 = vpop.permute.xlu0 %2615
        %2617 = vrot.lane.b32.xlu0 %v2492, 8
        %v2618 = vpop.permute.xlu0 %2617
        %2619 = vrot.lane.b32.xlu0 %v2497, 8
        %v2620 = vpop.permute.xlu0 %2619
        %2621 = vrot.lane.b32.xlu0 %v2500, 8
        %v2622 = vpop.permute.xlu0 %2621
        %2623 = vrot.lane.b32.xlu0 %v2505, 8
        %v2624 = vpop.permute.xlu0 %2623
        %2625 = vrot.lane.b32.xlu0 %v2508, 8
        %v2626 = vpop.permute.xlu0 %2625
        %2627 = vrot.lane.b32.xlu0 %v2513, 8
        %v2628 = vpop.permute.xlu0 %2627
        %2629 = vrot.lane.b32.xlu0 %v2516, 8
        %v2630 = vpop.permute.xlu0 %2629
        %2631 = vrot.lane.b32.xlu0 %v2521, 8
        %v2632 = vpop.permute.xlu0 %2631
        %2633 = vrot.lane.b32.xlu0 %v2524, 8
        %v2634 = vpop.permute.xlu0 %2633
        %2635 = vrot.lane.b32.xlu0 %v2529, 8
        %v2636 = vpop.permute.xlu0 %2635
        %2637 = vrot.lane.b32.xlu0 %v2532, 8
        %v2638 = vpop.permute.xlu0 %2637
        %2639 = vrot.lane.b32.xlu0 %v2537, 8
        %v2640 = vpop.permute.xlu0 %2639
        %2641 = vrot.lane.b32.xlu0 %v2540, 8
        %v2642 = vpop.permute.xlu0 %2641
        %2643 = vrot.lane.b32.xlu0 %v2545, 8
        %v2644 = vpop.permute.xlu0 %2643
        %2645 = vrot.lane.b32.xlu0 %v2548, 8
        %v2646 = vpop.permute.xlu0 %2645
        %v2679 = vsel %vm1772, %v1917, %v2584
        %v2680 = vsel %vm1772, %v1920, %v2586
        %v2681 = vsel %vm1772, %v1925, %v2588
        %v2682 = vsel %vm1772, %v1928, %v2590
        %v2683 = vsel %vm1772, %v1933, %v2592
        %v2684 = vsel %vm1772, %v1936, %v2594
        %v2685 = vsel %vm1772, %v1941, %v2596
        %v2686 = vsel %vm1772, %v1944, %v2598
        %v2687 = vsel %vm1772, %v1949, %v2600
        %v2688 = vsel %vm1772, %v1952, %v2602
        %v2689 = vsel %vm1772, %v1957, %v2604
        %v2690 = vsel %vm1772, %v1960, %v2606
        %v2691 = vsel %vm1772, %v1965, %v2608
        %v2692 = vsel %vm1772, %v1968, %v2610
        %v2693 = vsel %vm1772, %v1973, %v2612
        %v2694 = vsel %vm1772, %v1976, %v2614
        %v2695 = vsel %vm1772, %v1981, %v2616
        %v2696 = vsel %vm1772, %v1984, %v2618
        %v2697 = vsel %vm1772, %v1989, %v2620
        %v2698 = vsel %vm1772, %v1992, %v2622
        %v2699 = vsel %vm1772, %v1997, %v2624
        %v2700 = vsel %vm1772, %v2000, %v2626
        %v2701 = vsel %vm1772, %v2005, %v2628
        %v2702 = vsel %vm1772, %v2008, %v2630
        %v2703 = vsel %vm1772, %v2013, %v2632
        %v2704 = vsel %vm1772, %v2016, %v2634
        %v2705 = vsel %vm1772, %v2021, %v2636
        %v2706 = vsel %vm1772, %v2024, %v2638
        %v2707 = vsel %vm1772, %v2029, %v2640
        %v2708 = vsel %vm1772, %v2032, %v2642
        %v2709 = vsel %vm1772, %v2037, %v2644
        %v2710 = vsel %vm1772, %v2040, %v2646
        %v2711 = vld [vmem:[%s2] sm:$0x1]
        %v2713 = vlaneseq
        %v2714 = vshrl.u32 %v2713, 7
        %v2715 = vsub.s32 0, %v2714
        %v2716 = vrot.slane %v2711, %v2715
        %v2718 = vadd.f32 %v2679, %v2716
        %v2719 = vadd.f32 %v2680, %v2716
        %v2720 = vadd.f32 %v2681, %v2716
        %v2721 = vadd.f32 %v2682, %v2716
        %v2722 = vadd.f32 %v2683, %v2716
        %v2723 = vadd.f32 %v2684, %v2716
        %v2724 = vadd.f32 %v2685, %v2716
        %v2725 = vadd.f32 %v2686, %v2716
        %v2726 = vadd.f32 %v2687, %v2716
        %v2727 = vadd.f32 %v2688, %v2716
        %v2728 = vadd.f32 %v2689, %v2716
        %v2729 = vadd.f32 %v2690, %v2716
        %v2730 = vadd.f32 %v2691, %v2716
        %v2731 = vadd.f32 %v2692, %v2716
        %v2732 = vadd.f32 %v2693, %v2716
        %v2733 = vadd.f32 %v2694, %v2716
        %v2734 = vadd.f32 %v2695, %v2716
        %v2735 = vadd.f32 %v2696, %v2716
        %v2736 = vadd.f32 %v2697, %v2716
        %v2737 = vadd.f32 %v2698, %v2716
        %v2738 = vadd.f32 %v2699, %v2716
        %v2739 = vadd.f32 %v2700, %v2716
        %v2740 = vadd.f32 %v2701, %v2716
        %v2741 = vadd.f32 %v2702, %v2716
        %v2742 = vadd.f32 %v2703, %v2716
        %v2743 = vadd.f32 %v2704, %v2716
        %v2744 = vadd.f32 %v2705, %v2716
        %v2745 = vadd.f32 %v2706, %v2716
        %v2746 = vadd.f32 %v2707, %v2716
        %v2747 = vadd.f32 %v2708, %v2716
        %v2748 = vadd.f32 %v2709, %v2716
        %v2749 = vadd.f32 %v2710, %v2716
        %v2750 = vsel %vm1849, %v2718, 0.0
        %v2751 = vsel %vm1849, %v2719, 0.0
        %v2752 = vadd.f32 %v2750, %v2751
        %v2753 = vsel %vm1849, %v2720, 0.0
        %v2754 = vadd.f32 %v2752, %v2753
        %v2755 = vsel %vm1849, %v2721, 0.0
        %v2756 = vadd.f32 %v2754, %v2755
        %v2757 = vsel %vm1849, %v2722, 0.0
        %v2758 = vadd.f32 %v2756, %v2757
        %v2759 = vsel %vm1849, %v2723, 0.0
        %v2760 = vadd.f32 %v2758, %v2759
        %v2761 = vsel %vm1849, %v2724, 0.0
        %v2762 = vadd.f32 %v2760, %v2761
        %v2763 = vsel %vm1849, %v2725, 0.0
        %v2764 = vadd.f32 %v2762, %v2763
        %v2765 = vsel %vm1849, %v2726, 0.0
        %v2766 = vadd.f32 %v2764, %v2765
        %v2767 = vsel %vm1849, %v2727, 0.0
        %v2768 = vadd.f32 %v2766, %v2767
        %v2769 = vsel %vm1849, %v2728, 0.0
        %v2770 = vadd.f32 %v2768, %v2769
        %v2771 = vsel %vm1849, %v2729, 0.0
        %v2772 = vadd.f32 %v2770, %v2771
        %v2773 = vsel %vm1849, %v2730, 0.0
        %v2774 = vadd.f32 %v2772, %v2773
        %v2775 = vsel %vm1849, %v2731, 0.0
        %v2776 = vadd.f32 %v2774, %v2775
        %v2777 = vsel %vm1849, %v2732, 0.0
        %v2778 = vadd.f32 %v2776, %v2777
        %v2779 = vsel %vm1849, %v2733, 0.0
        %v2780 = vadd.f32 %v2778, %v2779
        %v2781 = vsel %vm1849, %v2734, 0.0
        %v2782 = vadd.f32 %v2780, %v2781
        %v2783 = vsel %vm1849, %v2735, 0.0
        %v2784 = vadd.f32 %v2782, %v2783
        %v2785 = vsel %vm1849, %v2736, 0.0
        %v2786 = vadd.f32 %v2784, %v2785
        %v2787 = vsel %vm1849, %v2737, 0.0
        %v2788 = vadd.f32 %v2786, %v2787
        %v2789 = vsel %vm1849, %v2738, 0.0
        %v2790 = vadd.f32 %v2788, %v2789
        %v2791 = vsel %vm1849, %v2739, 0.0
        %v2792 = vadd.f32 %v2790, %v2791
        %v2793 = vsel %vm1849, %v2740, 0.0
        %v2794 = vadd.f32 %v2792, %v2793
        %v2795 = vsel %vm1849, %v2741, 0.0
        %v2796 = vadd.f32 %v2794, %v2795
        %v2797 = vsel %vm1849, %v2742, 0.0
        %v2798 = vadd.f32 %v2796, %v2797
        %v2799 = vsel %vm1849, %v2743, 0.0
        %v2800 = vadd.f32 %v2798, %v2799
        %v2801 = vsel %vm1849, %v2744, 0.0
        %v2802 = vadd.f32 %v2800, %v2801
        %v2803 = vsel %vm1849, %v2745, 0.0
        %v2804 = vadd.f32 %v2802, %v2803
        %v2805 = vsel %vm1849, %v2746, 0.0
        %v2806 = vadd.f32 %v2804, %v2805
        %v2807 = vsel %vm1849, %v2747, 0.0
        %v2808 = vadd.f32 %v2806, %v2807
        %v2809 = vsel %vm1849, %v2748, 0.0
        %v2810 = vadd.f32 %v2808, %v2809
        %v2811 = vsel %vm1849, %v2749, 0.0
        %v2812 = vadd.f32 %v2810, %v2811
        %v2813 = vrot.slane %v2812, 4
        %v2814 = vadd.f32 %v2812, %v2813
        %v2815 = vrot.slane %v2814, 2
        %v2816 = vadd.f32 %v2814, %v2815
        %v2817 = vrot.slane %v2816, 1
        %v2818 = vadd.f32 %v2816, %v2817
        %vm2819 = vcmask 122880
        %2820 = vst.msk [vmem:[%s228] sm:$0x1] %vm2819, %v2818
        %v2821 = vmul.f32 %v2718, %v2718
        %v2822 = vmul.f32 %v2719, %v2719
        %v2823 = vmul.f32 %v2720, %v2720
        %v2824 = vmul.f32 %v2721, %v2721
        %v2825 = vmul.f32 %v2722, %v2722
        %v2826 = vmul.f32 %v2723, %v2723
        %v2827 = vmul.f32 %v2724, %v2724
        %v2828 = vmul.f32 %v2725, %v2725
        %v2829 = vmul.f32 %v2726, %v2726
        %v2830 = vmul.f32 %v2727, %v2727
        %v2831 = vmul.f32 %v2728, %v2728
        %v2832 = vmul.f32 %v2729, %v2729
        %v2833 = vmul.f32 %v2730, %v2730
        %v2834 = vmul.f32 %v2731, %v2731
        %v2835 = vmul.f32 %v2732, %v2732
        %v2836 = vmul.f32 %v2733, %v2733
        %v2837 = vmul.f32 %v2734, %v2734
        %v2838 = vmul.f32 %v2735, %v2735
        %v2839 = vmul.f32 %v2736, %v2736
        %v2840 = vmul.f32 %v2737, %v2737
        %v2841 = vmul.f32 %v2738, %v2738
        %v2842 = vmul.f32 %v2739, %v2739
        %v2843 = vmul.f32 %v2740, %v2740
        %v2844 = vmul.f32 %v2741, %v2741
        %v2845 = vmul.f32 %v2742, %v2742
        %v2846 = vmul.f32 %v2743, %v2743
        %v2847 = vmul.f32 %v2744, %v2744
        %v2848 = vmul.f32 %v2745, %v2745
        %v2849 = vmul.f32 %v2746, %v2746
        %v2850 = vmul.f32 %v2747, %v2747
        %v2851 = vmul.f32 %v2748, %v2748
        %v2852 = vmul.f32 %v2749, %v2749
        %v2853 = vsel %vm1849, %v2821, 0.0
        %v2854 = vsel %vm1849, %v2822, 0.0
        %v2855 = vadd.f32 %v2853, %v2854
        %v2856 = vsel %vm1849, %v2823, 0.0
        %v2857 = vadd.f32 %v2855, %v2856
        %v2858 = vsel %vm1849, %v2824, 0.0
        %v2859 = vadd.f32 %v2857, %v2858
        %v2860 = vsel %vm1849, %v2825, 0.0
        %v2861 = vadd.f32 %v2859, %v2860
        %v2862 = vsel %vm1849, %v2826, 0.0
        %v2863 = vadd.f32 %v2861, %v2862
        %v2864 = vsel %vm1849, %v2827, 0.0
        %v2865 = vadd.f32 %v2863, %v2864
        %v2866 = vsel %vm1849, %v2828, 0.0
        %v2867 = vadd.f32 %v2865, %v2866
        %v2868 = vsel %vm1849, %v2829, 0.0
        %v2869 = vadd.f32 %v2867, %v2868
        %v2870 = vsel %vm1849, %v2830, 0.0
        %v2871 = vadd.f32 %v2869, %v2870
        %v2872 = vsel %vm1849, %v2831, 0.0
        %v2873 = vadd.f32 %v2871, %v2872
        %v2874 = vsel %vm1849, %v2832, 0.0
        %v2875 = vadd.f32 %v2873, %v2874
        %v2876 = vsel %vm1849, %v2833, 0.0
        %v2877 = vadd.f32 %v2875, %v2876
        %v2878 = vsel %vm1849, %v2834, 0.0
        %v2879 = vadd.f32 %v2877, %v2878
        %v2880 = vsel %vm1849, %v2835, 0.0
        %v2881 = vadd.f32 %v2879, %v2880
        %v2882 = vsel %vm1849, %v2836, 0.0
        %v2883 = vadd.f32 %v2881, %v2882
        %v2884 = vsel %vm1849, %v2837, 0.0
        %v2885 = vadd.f32 %v2883, %v2884
        %v2886 = vsel %vm1849, %v2838, 0.0
        %v2887 = vadd.f32 %v2885, %v2886
        %v2888 = vsel %vm1849, %v2839, 0.0
        %v2889 = vadd.f32 %v2887, %v2888
        %v2890 = vsel %vm1849, %v2840, 0.0
        %v2891 = vadd.f32 %v2889, %v2890
        %v2892 = vsel %vm1849, %v2841, 0.0
        %v2893 = vadd.f32 %v2891, %v2892
        %v2894 = vsel %vm1849, %v2842, 0.0
        %v2895 = vadd.f32 %v2893, %v2894
        %v2896 = vsel %vm1849, %v2843, 0.0
        %v2897 = vadd.f32 %v2895, %v2896
        %v2898 = vsel %vm1849, %v2844, 0.0
        %v2899 = vadd.f32 %v2897, %v2898
        %v2900 = vsel %vm1849, %v2845, 0.0
        %v2901 = vadd.f32 %v2899, %v2900
        %v2902 = vsel %vm1849, %v2846, 0.0
        %v2903 = vadd.f32 %v2901, %v2902
        %v2904 = vsel %vm1849, %v2847, 0.0
        %v2905 = vadd.f32 %v2903, %v2904
        %v2906 = vsel %vm1849, %v2848, 0.0
        %v2907 = vadd.f32 %v2905, %v2906
        %v2908 = vsel %vm1849, %v2849, 0.0
        %v2909 = vadd.f32 %v2907, %v2908
        %v2910 = vsel %vm1849, %v2850, 0.0
        %v2911 = vadd.f32 %v2909, %v2910
        %v2912 = vsel %vm1849, %v2851, 0.0
        %v2913 = vadd.f32 %v2911, %v2912
        %v2914 = vsel %vm1849, %v2852, 0.0
        %v2915 = vadd.f32 %v2913, %v2914
        %v2916 = vrot.slane %v2915, 4
        %v2917 = vadd.f32 %v2915, %v2916
        %v2918 = vrot.slane %v2917, 2
        %v2919 = vadd.f32 %v2917, %v2918
        %v2920 = vrot.slane %v2919, 1
        %v2921 = vadd.f32 %v2919, %v2920
        %2922 = vst.msk [vmem:[%s228 + $0x1] sm:$0x1] %vm2819, %v2921
        %v2923 = vpack.c.bf16 %v2719, %v2718
        %v2924 = vpack.c.bf16 %v2721, %v2720
        %v2925 = vpack.c.bf16 %v2723, %v2722
        %v2926 = vpack.c.bf16 %v2725, %v2724
        %v2927 = vpack.c.bf16 %v2727, %v2726
        %v2928 = vpack.c.bf16 %v2729, %v2728
        %v2929 = vpack.c.bf16 %v2731, %v2730
        %v2930 = vpack.c.bf16 %v2733, %v2732
        %v2931 = vpack.c.bf16 %v2735, %v2734
        %v2932 = vpack.c.bf16 %v2737, %v2736
        %v2933 = vpack.c.bf16 %v2739, %v2738
        %v2934 = vpack.c.bf16 %v2741, %v2740
        %v2935 = vpack.c.bf16 %v2743, %v2742
        %v2936 = vpack.c.bf16 %v2745, %v2744
        %v2937 = vpack.c.bf16 %v2747, %v2746
        %v2938 = vpack.c.bf16 %v2749, %v2748
        %v2955 = vunpack.c.l.b16 %v2923
        %v2956 = vunpack.c.h.b16 %v2923
        %v2957 = vunpack.c.l.b16 %v2924
        %v2958 = vunpack.c.h.b16 %v2924
        %v2959 = vunpack.c.l.b16 %v2925
        %v2960 = vunpack.c.h.b16 %v2925
        %v2961 = vunpack.c.l.b16 %v2926
        %v2962 = vunpack.c.h.b16 %v2926
        %v2963 = vunpack.c.l.b16 %v2927
        %v2964 = vunpack.c.h.b16 %v2927
        %v2965 = vunpack.c.l.b16 %v2928
        %v2966 = vunpack.c.h.b16 %v2928
        %v2967 = vunpack.c.l.b16 %v2929
        %v2968 = vunpack.c.h.b16 %v2929
        %v2969 = vunpack.c.l.b16 %v2930
        %v2970 = vunpack.c.h.b16 %v2930
        %v2971 = vunpack.c.l.b16 %v2931
        %v2972 = vunpack.c.h.b16 %v2931
        %v2973 = vunpack.c.l.b16 %v2932
        %v2974 = vunpack.c.h.b16 %v2932
        %v2975 = vunpack.c.l.b16 %v2933
        %v2976 = vunpack.c.h.b16 %v2933
        %v2977 = vunpack.c.l.b16 %v2934
        %v2978 = vunpack.c.h.b16 %v2934
        %v2979 = vunpack.c.l.b16 %v2935
        %v2980 = vunpack.c.h.b16 %v2935
        %v2981 = vunpack.c.l.b16 %v2936
        %v2982 = vunpack.c.h.b16 %v2936
        %v2983 = vunpack.c.l.b16 %v2937
        %v2984 = vunpack.c.h.b16 %v2937
        %v2985 = vunpack.c.l.b16 %v2938
        %v2986 = vunpack.c.h.b16 %v2938
        %v2987 = vpack.c.b16 %v2955, %v2955
        %v2988 = vpack.c.b16 %v2956, %v2956
        %v2989 = vpack.c.b16 %v2957, %v2957
        %v2990 = vpack.c.b16 %v2958, %v2958
        %v2991 = vpack.c.b16 %v2959, %v2959
        %v2992 = vpack.c.b16 %v2960, %v2960
        %v2993 = vpack.c.b16 %v2961, %v2961
        %v2994 = vpack.c.b16 %v2962, %v2962
        %v2995 = vpack.c.b16 %v2963, %v2963
        %v2996 = vpack.c.b16 %v2964, %v2964
        %v2997 = vpack.c.b16 %v2965, %v2965
        %v2998 = vpack.c.b16 %v2966, %v2966
        %v2999 = vpack.c.b16 %v2967, %v2967
        %v3000 = vpack.c.b16 %v2968, %v2968
        %v3001 = vpack.c.b16 %v2969, %v2969
        %v3002 = vpack.c.b16 %v2970, %v2970
        %v3003 = vpack.c.b16 %v2971, %v2971
        %v3004 = vpack.c.b16 %v2972, %v2972
        %v3005 = vpack.c.b16 %v2973, %v2973
        %v3006 = vpack.c.b16 %v2974, %v2974
        %v3007 = vpack.c.b16 %v2975, %v2975
        %v3008 = vpack.c.b16 %v2976, %v2976
        %v3009 = vpack.c.b16 %v2977, %v2977
        %v3010 = vpack.c.b16 %v2978, %v2978
        %v3011 = vpack.c.b16 %v2979, %v2979
        %v3012 = vpack.c.b16 %v2980, %v2980
        %v3013 = vpack.c.b16 %v2981, %v2981
        %v3014 = vpack.c.b16 %v2982, %v2982
        %v3015 = vpack.c.b16 %v2983, %v2983
        %v3016 = vpack.c.b16 %v2984, %v2984
        %v3017 = vpack.c.b16 %v2985, %v2985
        %v3018 = vpack.c.b16 %v2986, %v2986
        %vm3051 = vcmask 125952
        %3052 = vst.msk [vmem:[%s221] sm:$0xf] %vm3051, %v2987
        %3053 = vst.msk [vmem:[%s221 + $0x4] sm:$0xf] %vm3051, %v2988
        %3054 = vst.msk [vmem:[%s221 + $0x8] sm:$0xf] %vm3051, %v2989
        %3055 = vst.msk [vmem:[%s221 + $0xc] sm:$0xf] %vm3051, %v2990
        %3056 = vst.msk [vmem:[%s221 + $0x10] sm:$0xf] %vm3051, %v2991
        %3057 = vst.msk [vmem:[%s221 + $0x14] sm:$0xf] %vm3051, %v2992
        %3058 = vst.msk [vmem:[%s221 + $0x18] sm:$0xf] %vm3051, %v2993
        %3059 = vst.msk [vmem:[%s221 + $0x1c] sm:$0xf] %vm3051, %v2994
        %3060 = vst.msk [vmem:[%s221 + $0x20] sm:$0xf] %vm3051, %v2995
        %3061 = vst.msk [vmem:[%s221 + $0x24] sm:$0xf] %vm3051, %v2996
        %3062 = vst.msk [vmem:[%s221 + $0x28] sm:$0xf] %vm3051, %v2997
        %3063 = vst.msk [vmem:[%s221 + $0x2c] sm:$0xf] %vm3051, %v2998
        %3064 = vst.msk [vmem:[%s221 + $0x30] sm:$0xf] %vm3051, %v2999
        %3065 = vst.msk [vmem:[%s221 + $0x34] sm:$0xf] %vm3051, %v3000
        %3066 = vst.msk [vmem:[%s221 + $0x38] sm:$0xf] %vm3051, %v3001
        %3067 = vst.msk [vmem:[%s221 + $0x3c] sm:$0xf] %vm3051, %v3002
        %3068 = vst.msk [vmem:[%s221 + $0x40] sm:$0xf] %vm3051, %v3003
        %3069 = vst.msk [vmem:[%s221 + $0x44] sm:$0xf] %vm3051, %v3004
        %3070 = vst.msk [vmem:[%s221 + $0x48] sm:$0xf] %vm3051, %v3005
        %3071 = vst.msk [vmem:[%s221 + $0x4c] sm:$0xf] %vm3051, %v3006
        %3072 = vst.msk [vmem:[%s221 + $0x50] sm:$0xf] %vm3051, %v3007
        %3073 = vst.msk [vmem:[%s221 + $0x54] sm:$0xf] %vm3051, %v3008
        %3074 = vst.msk [vmem:[%s221 + $0x58] sm:$0xf] %vm3051, %v3009
        %3075 = vst.msk [vmem:[%s221 + $0x5c] sm:$0xf] %vm3051, %v3010
        %3076 = vst.msk [vmem:[%s221 + $0x60] sm:$0xf] %vm3051, %v3011
        %3077 = vst.msk [vmem:[%s221 + $0x64] sm:$0xf] %vm3051, %v3012
        %3078 = vst.msk [vmem:[%s221 + $0x68] sm:$0xf] %vm3051, %v3013
        %3079 = vst.msk [vmem:[%s221 + $0x6c] sm:$0xf] %vm3051, %v3014
        %3080 = vst.msk [vmem:[%s221 + $0x70] sm:$0xf] %vm3051, %v3015
        %3081 = vst.msk [vmem:[%s221 + $0x74] sm:$0xf] %vm3051, %v3016
        %3082 = vst.msk [vmem:[%s221 + $0x78] sm:$0xf] %vm3051, %v3017
        %3083 = vst.msk [vmem:[%s221 + $0x7c] sm:$0xf] %vm3051, %v3018
        %s3084 = sand.u32 %s121, 1
        %s3085 = scalar_lea.sflag [#allocation3], %s3084
        %s3086 = sand.u32 %s121, 1
        %s3087 = smul.addr %s3086, 128
        %s3088 = scalar_lea.vmem [#allocation2], %s3087
        %s3089 = sand.u32 %s151, 1
        %s3090 = scalar_lea.sflag [#allocation5], %s3089
        %s3091 = sand.u32 %s151, 1
        %s3092 = smul.addr %s3091, 2
        %s3093 = scalar_lea.vmem [#allocation4], %s3092
        // Predicated region
        $region33: #{tpu_custom_call.1} parent=31 // pred_check
          %p3094 = pneg %p131
        $region34: #{tpu_custom_call.1} parent=31 // pred_check_branch
          %3096 = sbr.rel (%p3094) target = $region36
        $region35: #{tpu_custom_call.1} parent=31 // pred_region
          #allocation7 [shape = 'u32[6]{0}', space=smem, size = 0x18, scoped, tag = 'DMA stride descriptor']
          %s3097 = smul.u32 16, %s28
          %s3099 = ssub.s32 2048, 2048
          %3100 = vsyncadd %s3085, %s3099
          %s3101 = smul.addr %s29, 2
          %s3102 = smul.addr %s3097, 4
          %s3103 = sadd.s32 %s3101, %s3102
          %s3104 = smul.addr %s27, 64
          %s3105 = sadd.s32 %s3103, %s3104
          %s3106 = smul.addr %s3105, 64
          %s3107 = scalar_lea.hbm %s3, %s3106
          %s3109 = sshll.u32 1, 14
          %s3110 = sxor.u32 4294967295, %s3109
          %s3113 = sshll.u32 7, 18
          %s3114 = sxor.u32 4294967295, %s3113
          %s3115 = sand.u32 0, %s3114
          %s3117 = sor.u32 %s3115, 0
          %s3119 = sshll.u32 3, 24
          %s3120 = sxor.u32 4294967295, %s3119
          %s3121 = sand.u32 %s3117, %s3120
          %s3123 = sor.u32 %s3121, 0
          %s3124 = sshll.u32 %s3088, 4
          %s3125 = int_to_ptr.vmem [resolvable:$true] %s3124
          %3131 = sst [smem:[#allocation7]] 128
          %s3132 = scalar_lea.smem [#allocation7], 1
          %3133 = sst [smem:[%s3132]] 256
          %s3134 = scalar_lea.smem [#allocation7], 2
          %3135 = sst [smem:[%s3134]] 2
          %s3136 = scalar_lea.smem [#allocation7], 3
          %3137 = sst [smem:[%s3136]] 64
          %s3138 = scalar_lea.smem [#allocation7], 4
          %3139 = sst [smem:[%s3138]] 64
          %s3140 = scalar_lea.smem [#allocation7], 5
          %3141 = sst [smem:[%s3140]] 4
          %3143 = dma.general %s3125, 2048, %s3107, %s3085, [#allocation6], [#allocation7], %s3123, 0
        $region36: #{tpu_custom_call.1} parent=31 // pred_fallthru
          _
        // Predicated region
        $region37: #{tpu_custom_call.1} parent=31 // pred_check
          %p3144 = pneg %p161
        $region38: #{tpu_custom_call.1} parent=31 // pred_check_branch
          %3146 = sbr.rel (%p3144) target = $region40
        $region39: #{tpu_custom_call.1} parent=31 // pred_region
          %s3148 = ssub.s32 32, 32
          %3149 = vsyncadd %s3090, %s3148
          %s3150 = smul.addr %s28, 2
          %s3151 = sadd.s32 %s29, %s3150
          %s3152 = smul.addr %s27, 2
          %s3153 = sadd.s32 %s3151, %s3152
          %s3154 = smul.addr %s3153, 32
          %s3155 = scalar_lea.hbm %s4, %s3154
          %s3157 = sshll.u32 %s3093, 4
          %s3158 = int_to_ptr.vmem [resolvable:$true] %s3157
          %3160 = dma.vmem_to_hbm [thread:$0]  %s3158, 32, %s3155, %s3090
        $region40: #{tpu_custom_call.1} parent=31 // pred_fallthru
          _
      $region32: #{tpu_custom_call.1} parent=5 // pred_fallthru
        _
      %p3161 = scmp.le.s32.totalorder 2, %s17
      // Predicated region
      $region41: #{tpu_custom_call.1} parent=5 // pred_check
        %p3162 = pneg %p3161
      $region42: #{tpu_custom_call.1} parent=5 // pred_check_branch
        %3164 = sbr.rel (%p3162) target = $region44
      $region43: #{tpu_custom_call.1} parent=5 // pred_region
        %s3165 = ssub.s32 %s17, 2
        // Predicated region
        $region45: #{tpu_custom_call.1} parent=43 // pred_check
          %p3166 = pneg %p137
        $region46: #{tpu_custom_call.1} parent=43 // pred_check_branch
          %3168 = sbr.rel (%p3166) target = $region48
        $region47: #{tpu_custom_call.1} parent=43 // pred_region
          %s3169 = sand.u32 %s122, 1
          %s3170 = scalar_lea.sflag [#allocation3], %s3169
          %s3171 = sand.u32 %s122, 1
          %s3172 = smul.addr %s3171, 128
          %s3173 = scalar_lea.vmem [#allocation2], %s3172
          %3174 = dma.done %s3170, 2048
        $region48: #{tpu_custom_call.1} parent=43 // pred_fallthru
          _
        // Predicated region
        $region49: #{tpu_custom_call.1} parent=43 // pred_check
          %p3175 = pneg %p167
        $region50: #{tpu_custom_call.1} parent=43 // pred_check_branch
          %3177 = sbr.rel (%p3175) target = $region52
        $region51: #{tpu_custom_call.1} parent=43 // pred_region
          %s3178 = sand.u32 %s152, 1
          %s3179 = scalar_lea.sflag [#allocation5], %s3178
          %s3180 = sand.u32 %s152, 1
          %s3181 = smul.addr %s3180, 2
          %s3182 = scalar_lea.vmem [#allocation4], %s3181
          %3183 = dma.done %s3179, 32
        $region52: #{tpu_custom_call.1} parent=43 // pred_fallthru
          _
      $region44: #{tpu_custom_call.1} parent=5 // pred_fallthru
        _
    $region6: #{tpu_custom_call.1} parent=1 // loop_footer
      %s21 = sadd.s32 1, %s17
    $region7: #{tpu_custom_call.1} parent=1 // loop_footer_branch
      %16 = sbr.rel target = $region3
    $region8: #{tpu_custom_call.1} parent=1 // loop_exit
      _
    %3184 = vsyncpa [#allocation3], 1
    %s3185 = scalar_lea.sflag [#allocation3], 1
    %3186 = vsyncpa %s3185, 1
    %3187 = vsyncpa [#allocation5], 1
    %s3188 = scalar_lea.sflag [#allocation5], 1
    %3189 = vsyncpa %s3188, 1

</llo_original>
